<compile_context>
chip_gen: v7x
topology: tpu7x:2x2x1
jax: 0.10.0
libtpu: 0.0.40
codegen_flags: <defaults>
</compile_context>

<pallas_src>
import jax
import jax.numpy as jnp
from jax.experimental import pallas as pl
from jax.experimental.pallas import tpu as pltpu


# ------------------------------ Pallas kernels ------------------------------

def _gcn_layer1_kernel(a_ref, xw1_ref, b1_ref, w2_ref, emb_ref, hw2_ref,
                       acc_ref):
    """Layer 1: emb[r] = ELU(sum_k A[r,k] @ XW1[k] + b1); hw2[r] = emb[r] @ W2.

    Grid = (row_tile r, source/reduction tile k); k innermost.
    XW1 is a whole-array VMEM-resident input (constant index map).
    """
    k = pl.program_id(1)
    nk = pl.num_programs(1)
    tk = a_ref.shape[1]

    @pl.when(k == 0)
    def _():
        acc_ref[...] = jnp.zeros_like(acc_ref)

    col0 = pl.multiple_of(k * tk, tk)
    acc_ref[...] += jnp.dot(a_ref[...], xw1_ref[pl.ds(col0, tk), :],
                            preferred_element_type=jnp.float32)

    @pl.when(k == nk - 1)
    def _():
        h = acc_ref[...] + b1_ref[...]
        # ELU(alpha=1); exp runs on the EUP slot.  The clamp keeps the dead
        # branch of the where finite for large positive h.
        h = jnp.where(h > 0.0, h, jnp.exp(jnp.minimum(h, 0.0)) - 1.0)
        emb_ref[...] = h.astype(emb_ref.dtype)
        # Project into layer-2 output space now (f_out <= hidden): layer 2
        # then only aggregates the narrow, lane-dense hw2 slab.
        hw2_ref[...] = jnp.dot(h.astype(jnp.bfloat16), w2_ref[...],
                               preferred_element_type=jnp.float32
                               ).astype(hw2_ref.dtype)


def _gcn_layer2_kernel(a_ref, hw2_ref, b2_ref, out_ref, acc_ref):
    """Layer 2: out[r] = sigmoid(sum_k A[r,k] @ HW2[k] + b2)."""
    k = pl.program_id(1)
    nk = pl.num_programs(1)
    tk = a_ref.shape[1]

    @pl.when(k == 0)
    def _():
        acc_ref[...] = jnp.zeros_like(acc_ref)

    col0 = pl.multiple_of(k * tk, tk)
    acc_ref[...] += jnp.dot(a_ref[...], hw2_ref[pl.ds(col0, tk), :],
                            preferred_element_type=jnp.float32)

    @pl.when(k == nk - 1)
    def _():
        z = acc_ref[...] + b2_ref[...]
        # sigmoid via EUP exp + approx reciprocal (no VALU divide);
        # ~1e-3 relative error, fine for inference probabilities here.
        out_ref[...] = pl.reciprocal(1.0 + jnp.exp(-z),
                                     approx=True).astype(out_ref.dtype)


# ------------------------------- Wrapper -------------------------------------

def _round_up(v, m):
    return ((v + m - 1) // m) * m


def _pick_tile(n_pad, candidates):
    for c in candidates:
        if n_pad % c == 0:
            return c
    return n_pad


def _pad2d(x, rows, cols):
    r, c = x.shape
    return jnp.pad(x, ((0, rows - r), (0, cols - c)))


def _device_tuning():
    """Per-generation tile candidates and scoped-VMEM limit.

    v5e/v6e have 128 MiB physical VMEM -> big tiles + 64 MiB limit.
    v7x has 64 MiB per TensorCore -> keep 512-wide tiles and <= 40 MiB.
    Unknown devices get the conservative setting.
    """
    kind = ""
    try:
        kind = jax.devices()[0].device_kind.lower()
    except Exception:
        pass
    if ("v5" in kind) or ("v6" in kind):
        return (1024, 512, 256, 128), 64 * 1024 * 1024
    return (512, 256, 128), 40 * 1024 * 1024


def fused_gcn2(a_hat, x, w1, b1, w2, b2):
    """(out, emb) for the 2-layer GCN via two tiled pallas_calls.

    Note: for tiny graphs (n_pad <= ~512) a plain fused XLA einsum would beat
    the kernel launch/padding overhead; the Pallas path is always taken here so
    the kernels are exercised.
    """
    n, _ = x.shape
    hidden = w1.shape[1]
    n_out = w2.shape[1]

    n_pad = _round_up(n, 128)
    h_pad = _round_up(hidden, 128)   # no padding beyond 128: kernel is HBM-bound
    c_pad = _round_up(n_out, 128)    # lane-dense output slab for f_out = 1

    tile_candidates, vmem_limit = _device_tuning()
    tm = _pick_tile(n_pad, tile_candidates)   # node-row tile
    tk = tm                                   # source-node (reduction) tile
    rt = n_pad // tm
    kt = n_pad // tk

    # bf16 matmul operands (halves A_hat HBM bytes); biases stay f32.
    a_p = _pad2d(a_hat, n_pad, n_pad).astype(jnp.bfloat16)

    # Precompute XW1 = X @ W1 in f32 (tiny: N x f_in x hidden) wrapper-side;
    # streamed once into VMEM and kept resident across all A tiles.
    xw1 = jnp.dot(x.astype(jnp.float32), w1.astype(jnp.float32))
    xw1_p = _pad2d(xw1, n_pad, h_pad).astype(jnp.bfloat16)

    w2_p = _pad2d(w2.astype(jnp.float32), h_pad, c_pad).astype(jnp.bfloat16)
    b1_p = _pad2d(b1.reshape(1, -1).astype(jnp.float32), 1, h_pad)
    b2_p = _pad2d(b2.reshape(1, -1).astype(jnp.float32), 1, c_pad)

    cparams = pltpu.CompilerParams(
        dimension_semantics=("parallel", "arbitrary"),
        vmem_limit_bytes=vmem_limit,
    )

    # ---------------- layer 1: emb = ELU(A @ XW1 + b1), hw2 = emb @ W2 -------
    emb_p, hw2_p = pl.pallas_call(
        _gcn_layer1_kernel,
        out_shape=(
            jax.ShapeDtypeStruct((n_pad, h_pad), jnp.bfloat16),   # emb
            jax.ShapeDtypeStruct((n_pad, c_pad), jnp.bfloat16),   # hw2
        ),
        grid=(rt, kt),
        in_specs=[
            pl.BlockSpec((tm, tk), lambda r, k: (r, k)),            # A tile
            pl.BlockSpec((n_pad, h_pad), lambda r, k: (0, 0)),      # XW1 (resident)
            pl.BlockSpec((1, h_pad), lambda r, k: (0, 0)),          # b1
            pl.BlockSpec((h_pad, c_pad), lambda r, k: (0, 0)),      # W2
        ],
        out_specs=(
            pl.BlockSpec((tm, h_pad), lambda r, k: (r, 0)),         # emb
            pl.BlockSpec((tm, c_pad), lambda r, k: (r, 0)),         # hw2
        ),
        scratch_shapes=[pltpu.VMEM((tm, h_pad), jnp.float32)],      # f32 acc
        compiler_params=cparams,
    )(a_p, xw1_p, b1_p, w2_p)

    # ---------------- layer 2: out = sigmoid(A @ hw2 + b2) -------------------
    out_p = pl.pallas_call(
        _gcn_layer2_kernel,
        out_shape=jax.ShapeDtypeStruct((n_pad, c_pad), jnp.bfloat16),
        grid=(rt, kt),
        in_specs=[
            pl.BlockSpec((tm, tk), lambda r, k: (r, k)),            # A tile
            pl.BlockSpec((n_pad, c_pad), lambda r, k: (0, 0)),      # hw2 (resident)
            pl.BlockSpec((1, c_pad), lambda r, k: (0, 0)),          # b2
        ],
        out_specs=pl.BlockSpec((tm, c_pad), lambda r, k: (r, 0)),   # out
        scratch_shapes=[pltpu.VMEM((tm, c_pad), jnp.float32)],      # f32 acc
        compiler_params=cparams,
    )(a_p, hw2_p, b2_p)

    out = out_p[:n, :n_out].astype(jnp.float32)
    emb = emb_p[:n, :hidden].astype(jnp.float32)
    return out, emb


# ------------------------------- Glue (JAX) ----------------------------------

def build_normalized_adjacency(edge_index, edge_weight, num_nodes):
    """Dense D^-1/2 (A + I) D^-1/2 with A[dst, src] = edge_weight (PyG GCNConv
    symmetric normalization, self-loop weight = 1).  Plain-JAX glue: the
    data-dependent scatter-add has no clean dense-tile Pallas equivalent."""
    src = edge_index[0]
    dst = edge_index[1]
    loop = jnp.arange(num_nodes, dtype=src.dtype)
    src = jnp.concatenate([src, loop])
    dst = jnp.concatenate([dst, loop])
    ew = jnp.concatenate(
        [edge_weight.astype(jnp.float32), jnp.ones((num_nodes,), jnp.float32)])
    deg = jnp.zeros((num_nodes,), jnp.float32).at[dst].add(ew)
    deg_inv_sqrt = jnp.where(deg > 0, 1.0 / jnp.sqrt(deg), 0.0)
    norm = deg_inv_sqrt[src] * ew * deg_inv_sqrt[dst]
    a_hat = jnp.zeros((num_nodes, num_nodes), jnp.float32).at[dst, src].add(norm)
    return a_hat


def glorot(key, shape):
    fan_in, fan_out = shape
    limit = jnp.sqrt(6.0 / (fan_in + fan_out))
    return jax.random.uniform(key, shape, jnp.float32, -limit, limit)


def net_forward(x, edge_index, edge_weight, params):
    """Forward of `Net` with layer == 2, training=False (Pallas path)."""
    n = x.shape[0]
    a_hat = build_normalized_adjacency(edge_index, edge_weight, n)
    # F.dropout(p=0.1, training=False) is the identity at inference.
    out, emb = fused_gcn2(a_hat, x, params["w1"], params["b1"],
                          params["w2"], params["b2"])
    return out, emb


def net_forward_reference(x, edge_index, edge_weight, params):
    """Pure-JAX f32 reference for a loose-tolerance correctness check."""
    n = x.shape[0]
    a_hat = build_normalized_adjacency(edge_index, edge_weight, n)
    h1 = a_hat @ (x @ params["w1"]) + params["b1"][None, :]
    h1 = jnp.where(h1 > 0, h1, jnp.exp(h1) - 1.0)            # ELU
    emb = h1
    out = jax.nn.sigmoid(a_hat @ (h1 @ params["w2"]) + params["b2"][None, :])
    return out, emb


# ---------------------------------- Main -------------------------------------

if __name__ == "__main__":
    key = jax.random.PRNGKey(0)
    k_x, k_ei, k_ew, k_w1, k_w2 = jax.random.split(key, 5)

    # Small synthetic graph consistent with the module's assumptions.
    num_nodes = 16        # N
    num_features = 8      # data.x.size(1)
    hidden = 32           # params['dimension']
    num_edges = 48

    x = jax.random.normal(k_x, (num_nodes, num_features), jnp.float32)
    edge_index = jax.random.randint(k_ei, (2, num_edges), 0, num_nodes,
                                    dtype=jnp.int32)
    edge_weight = jax.random.uniform(k_ew, (num_edges,), jnp.float32, 0.1, 1.0)

    params = {
        "w1": glorot(k_w1, (num_features, hidden)),
        "b1": jnp.zeros((hidden,), jnp.float32),
        "w2": glorot(k_w2, (hidden, 1)),
        "b2": jnp.zeros((1,), jnp.float32),
    }

    out, emb = jax.jit(net_forward)(x, edge_index, edge_weight, params)
    jax.block_until_ready(out)
    jax.block_until_ready(emb)

    assert out.shape == (num_nodes, 1)
    assert emb.shape == (num_nodes, hidden)
    assert bool(jnp.all(jnp.isfinite(out))) and bool(jnp.all(jnp.isfinite(emb)))

    # Loose-tolerance check vs. a pure-JAX f32 reference (kernel uses bf16
    # matmul operands / bf16 outputs with f32 accumulation).
    out_ref, emb_ref = net_forward_reference(x, edge_index, edge_weight, params)
    assert bool(jnp.allclose(out, out_ref, atol=5e-2, rtol=5e-2)), "out mismatch"
    assert bool(jnp.allclose(emb, emb_ref, atol=5e-2, rtol=5e-2)), "emb mismatch"

    print("KERNEL_OK")
</pallas_src>

<mosaic_0001>
module attributes {stable_mosaic.version = 11 : i64} {
  func.func private @main(%arg0: i32) attributes {dimension_semantics = [#tpu.dimension_semantics<core_parallel>], iteration_bounds = array<i64: 2>, tpu.core_type = #tpu.core_type<sc_scalar_subcore>, window_params = []} {
    return
  }
}

module attributes {stable_mosaic.version = 11 : i64} {
  func.func private @main(%arg0: i32) attributes {dimension_semantics = [#tpu.dimension_semantics<core_parallel>], iteration_bounds = array<i64: 2>, tpu.core_type = #tpu.core_type<sc_scalar_subcore>, window_params = []} {
    return
  }
}

module attributes {stable_mosaic.version = 11 : i64} {
  func.func @_gcn_layer1_kernel(%arg0: i32, %arg1: i32, %arg2: memref<128x128xbf16, #tpu.memory_space<vmem>>, %arg3: memref<128x128xbf16, #tpu.memory_space<vmem>>, %arg4: memref<1x128xf32, #tpu.memory_space<vmem>>, %arg5: memref<128x128xbf16, #tpu.memory_space<vmem>>, %arg6: memref<128x128xbf16, #tpu.memory_space<vmem>>, %arg7: memref<128x128xbf16, #tpu.memory_space<vmem>>, %arg8: memref<128x128xf32, #tpu.memory_space<vmem>>) attributes {dimension_semantics = [#tpu.dimension_semantics<parallel>, #tpu.dimension_semantics<arbitrary>], iteration_bounds = array<i64: 1, 1>, scalar_prefetch = 0 : i64, scratch_operands = 1 : i64, tpu.core_type = #tpu.core_type<tc>, window_params = [{transform_indices = @transform_0, window_bounds = array<i64: 128, 128>}, {pipeline_mode = #tpu.pipeline_mode<synchronous>, transform_indices = @transform_1, window_bounds = array<i64: 128, 128>}, {pipeline_mode = #tpu.pipeline_mode<synchronous>, transform_indices = @transform_2, window_bounds = array<i64: 1, 128>}, {pipeline_mode = #tpu.pipeline_mode<synchronous>, transform_indices = @transform_3, window_bounds = array<i64: 128, 128>}, {transform_indices = @transform_4, window_bounds = array<i64: 128, 128>}, {transform_indices = @transform_5, window_bounds = array<i64: 128, 128>}]} {
    %c0_i32 = arith.constant 0 : i32
    %0 = arith.cmpi eq, %arg1, %c0_i32 : i32
    %1 = arith.extui %0 : i1 to i32
    %c0_i32_0 = arith.constant 0 : i32
    %2 = arith.cmpi ne, %1, %c0_i32_0 : i32
    scf.if %2 {
      %cst_9 = arith.constant 0.000000e+00 : f32
      %15 = vector.broadcast %cst_9 : f32 to vector<128x128xf32>
      %c0_10 = arith.constant 0 : index
      %c0_11 = arith.constant 0 : index
      %16 = vector.load %arg8[%c0_10, %c0_11] : memref<128x128xf32, #tpu.memory_space<vmem>>, vector<128x128xf32>
      tpu.vector_store %arg8[%c0_10, %c0_11], %15 {strides = array<i32>} : memref<128x128xf32, #tpu.memory_space<vmem>>, vector<128x128xf32>,
    } else {
    }
    %c128_i32 = arith.constant 128 : i32
    %3 = arith.muli %arg1, %c128_i32 : i32
    %4 = tpu.assume_multiple %3, 128 : i32
    %c0 = arith.constant 0 : index
    %c0_1 = arith.constant 0 : index
    %5 = vector.load %arg8[%c0, %c0_1] : memref<128x128xf32, #tpu.memory_space<vmem>>, vector<128x128xf32>
    %c0_2 = arith.constant 0 : index
    %c0_3 = arith.constant 0 : index
    %6 = vector.load %arg2[%c0_2, %c0_3] : memref<128x128xbf16, #tpu.memory_space<vmem>>, vector<128x128xbf16>
    %7 = arith.index_cast %4 : i32 to index
    %c0_4 = arith.constant 0 : index
    %8 = vector.load %arg3[%7, %c0_4] : memref<128x128xbf16, #tpu.memory_space<vmem>>, vector<128x128xbf16>
    %cst = arith.constant dense<0.000000e+00> : vector<128x128xf32>
    %9 = tpu.matmul %6, %8, %cst {dimension_numbers = #tpu.dot_dimension_numbers<[1], [0], [0], [1], [0, 0, 1, 1], [], []>} : vector<128x128xbf16>, vector<128x128xbf16>, vector<128x128xf32> -> vector<128x128xf32>
    %10 = arith.addf %5, %9 : vector<128x128xf32>
    %c0_5 = arith.constant 0 : index
    %c0_6 = arith.constant 0 : index
    %11 = vector.load %arg8[%c0_5, %c0_6] : memref<128x128xf32, #tpu.memory_space<vmem>>, vector<128x128xf32>
    tpu.vector_store %arg8[%c0_5, %c0_6], %10 {strides = array<i32>} : memref<128x128xf32, #tpu.memory_space<vmem>>, vector<128x128xf32>,
    %c0_i32_7 = arith.constant 0 : i32
    %12 = arith.cmpi eq, %arg1, %c0_i32_7 : i32
    %13 = arith.extui %12 : i1 to i32
    %c0_i32_8 = arith.constant 0 : i32
    %14 = arith.cmpi ne, %13, %c0_i32_8 : i32
    scf.if %14 {
      %c0_9 = arith.constant 0 : index
      %c0_10 = arith.constant 0 : index
      %15 = vector.load %arg8[%c0_9, %c0_10] : memref<128x128xf32, #tpu.memory_space<vmem>>, vector<128x128xf32>
      %c0_11 = arith.constant 0 : index
      %c0_12 = arith.constant 0 : index
      %16 = vector.load %arg4[%c0_11, %c0_12] : memref<1x128xf32, #tpu.memory_space<vmem>>, vector<1x128xf32>
      %17 = vector.broadcast %16 : vector<1x128xf32> to vector<128x128xf32>
      %18 = arith.addf %15, %17 : vector<128x128xf32>
      %cst_13 = arith.constant 0.000000e+00 : f32
      %19 = vector.broadcast %cst_13 : f32 to vector<128x128xf32>
      %20 = arith.cmpf ogt, %18, %19 : vector<128x128xf32>
      %cst_14 = arith.constant 0.000000e+00 : f32
      %21 = vector.broadcast %cst_14 : f32 to vector<128x128xf32>
      %22 = arith.minimumf %18, %21 : vector<128x128xf32>
      %23 = math.exp %22 : vector<128x128xf32>
      %cst_15 = arith.constant 1.000000e+00 : f32
      %24 = vector.broadcast %cst_15 : f32 to vector<128x128xf32>
      %25 = arith.subf %23, %24 : vector<128x128xf32>
      %26 = arith.select %20, %18, %25 : vector<128x128xi1>, vector<128x128xf32>
      %27 = arith.truncf %26 : vector<128x128xf32> to vector<128x128xbf16>
      %c0_16 = arith.constant 0 : index
      %c0_17 = arith.constant 0 : index
      %28 = vector.load %arg6[%c0_16, %c0_17] : memref<128x128xbf16, #tpu.memory_space<vmem>>, vector<128x128xbf16>
      tpu.vector_store %arg6[%c0_16, %c0_17], %27 {strides = array<i32>} : memref<128x128xbf16, #tpu.memory_space<vmem>>, vector<128x128xbf16>,
      %29 = arith.truncf %26 : vector<128x128xf32> to vector<128x128xbf16>
      %c0_18 = arith.constant 0 : index
      %c0_19 = arith.constant 0 : index
      %30 = vector.load %arg5[%c0_18, %c0_19] : memref<128x128xbf16, #tpu.memory_space<vmem>>, vector<128x128xbf16>
      %cst_20 = arith.constant dense<0.000000e+00> : vector<128x128xf32>
      %31 = tpu.matmul %29, %30, %cst_20 {dimension_numbers = #tpu.dot_dimension_numbers<[1], [0], [0], [1], [0, 0, 1, 1], [], []>} : vector<128x128xbf16>, vector<128x128xbf16>, vector<128x128xf32> -> vector<128x128xf32>
      %32 = arith.truncf %31 : vector<128x128xf32> to vector<128x128xbf16>
      %c0_21 = arith.constant 0 : index
      %c0_22 = arith.constant 0 : index
      %33 = vector.load %arg7[%c0_21, %c0_22] : memref<128x128xbf16, #tpu.memory_space<vmem>>, vector<128x128xbf16>
      tpu.vector_store %arg7[%c0_21, %c0_22], %32 {strides = array<i32>} : memref<128x128xbf16, #tpu.memory_space<vmem>>, vector<128x128xbf16>,
    } else {
    }
    return
  }
  func.func @transform_0(%arg0: i32, %arg1: i32) -> (i32, i32) {
    %c0_i32 = arith.constant 0 : i32
    return %arg0, %arg1 : i32, i32
  }
  func.func @transform_1(%arg0: i32, %arg1: i32) -> (i32, i32) {
    %c0_i32 = arith.constant 0 : i32
    %c0_i32_0 = arith.constant 0 : i32
    %c0_i32_1 = arith.constant 0 : i32
    return %c0_i32, %c0_i32_0 : i32, i32
  }
  func.func @transform_2(%arg0: i32, %arg1: i32) -> (i32, i32) {
    %c0_i32 = arith.constant 0 : i32
    %c0_i32_0 = arith.constant 0 : i32
    %c0_i32_1 = arith.constant 0 : i32
    return %c0_i32, %c0_i32_0 : i32, i32
  }
  func.func @transform_3(%arg0: i32, %arg1: i32) -> (i32, i32) {
    %c0_i32 = arith.constant 0 : i32
    %c0_i32_0 = arith.constant 0 : i32
    %c0_i32_1 = arith.constant 0 : i32
    return %c0_i32, %c0_i32_0 : i32, i32
  }
  func.func @transform_4(%arg0: i32, %arg1: i32) -> (i32, i32) {
    %c0_i32 = arith.constant 0 : i32
    %c0_i32_0 = arith.constant 0 : i32
    return %arg0, %c0_i32 : i32, i32
  }
  func.func @transform_5(%arg0: i32, %arg1: i32) -> (i32, i32) {
    %c0_i32 = arith.constant 0 : i32
    %c0_i32_0 = arith.constant 0 : i32
    return %arg0, %c0_i32 : i32, i32
  }
}

module attributes {stable_mosaic.version = 11 : i64} {
  func.func @_gcn_layer2_kernel(%arg0: i32, %arg1: i32, %arg2: memref<128x128xbf16, #tpu.memory_space<vmem>>, %arg3: memref<128x128xbf16, #tpu.memory_space<vmem>>, %arg4: memref<1x128xf32, #tpu.memory_space<vmem>>, %arg5: memref<128x128xbf16, #tpu.memory_space<vmem>>, %arg6: memref<128x128xf32, #tpu.memory_space<vmem>>) attributes {dimension_semantics = [#tpu.dimension_semantics<parallel>, #tpu.dimension_semantics<arbitrary>], iteration_bounds = array<i64: 1, 1>, scalar_prefetch = 0 : i64, scratch_operands = 1 : i64, tpu.core_type = #tpu.core_type<tc>, window_params = [{transform_indices = @transform_0, window_bounds = array<i64: 128, 128>}, {pipeline_mode = #tpu.pipeline_mode<synchronous>, transform_indices = @transform_1, window_bounds = array<i64: 128, 128>}, {pipeline_mode = #tpu.pipeline_mode<synchronous>, transform_indices = @transform_2, window_bounds = array<i64: 1, 128>}, {transform_indices = @transform_3, window_bounds = array<i64: 128, 128>}]} {
    %c0_i32 = arith.constant 0 : i32
    %0 = arith.cmpi eq, %arg1, %c0_i32 : i32
    %1 = arith.extui %0 : i1 to i32
    %c0_i32_0 = arith.constant 0 : i32
    %2 = arith.cmpi ne, %1, %c0_i32_0 : i32
    scf.if %2 {
      %cst_9 = arith.constant 0.000000e+00 : f32
      %15 = vector.broadcast %cst_9 : f32 to vector<128x128xf32>
      %c0_10 = arith.constant 0 : index
      %c0_11 = arith.constant 0 : index
      %16 = vector.load %arg6[%c0_10, %c0_11] : memref<128x128xf32, #tpu.memory_space<vmem>>, vector<128x128xf32>
      tpu.vector_store %arg6[%c0_10, %c0_11], %15 {strides = array<i32>} : memref<128x128xf32, #tpu.memory_space<vmem>>, vector<128x128xf32>,
    } else {
    }
    %c128_i32 = arith.constant 128 : i32
    %3 = arith.muli %arg1, %c128_i32 : i32
    %4 = tpu.assume_multiple %3, 128 : i32
    %c0 = arith.constant 0 : index
    %c0_1 = arith.constant 0 : index
    %5 = vector.load %arg6[%c0, %c0_1] : memref<128x128xf32, #tpu.memory_space<vmem>>, vector<128x128xf32>
    %c0_2 = arith.constant 0 : index
    %c0_3 = arith.constant 0 : index
    %6 = vector.load %arg2[%c0_2, %c0_3] : memref<128x128xbf16, #tpu.memory_space<vmem>>, vector<128x128xbf16>
    %7 = arith.index_cast %4 : i32 to index
    %c0_4 = arith.constant 0 : index
    %8 = vector.load %arg3[%7, %c0_4] : memref<128x128xbf16, #tpu.memory_space<vmem>>, vector<128x128xbf16>
    %cst = arith.constant dense<0.000000e+00> : vector<128x128xf32>
    %9 = tpu.matmul %6, %8, %cst {dimension_numbers = #tpu.dot_dimension_numbers<[1], [0], [0], [1], [0, 0, 1, 1], [], []>} : vector<128x128xbf16>, vector<128x128xbf16>, vector<128x128xf32> -> vector<128x128xf32>
    %10 = arith.addf %5, %9 : vector<128x128xf32>
    %c0_5 = arith.constant 0 : index
    %c0_6 = arith.constant 0 : index
    %11 = vector.load %arg6[%c0_5, %c0_6] : memref<128x128xf32, #tpu.memory_space<vmem>>, vector<128x128xf32>
    tpu.vector_store %arg6[%c0_5, %c0_6], %10 {strides = array<i32>} : memref<128x128xf32, #tpu.memory_space<vmem>>, vector<128x128xf32>,
    %c0_i32_7 = arith.constant 0 : i32
    %12 = arith.cmpi eq, %arg1, %c0_i32_7 : i32
    %13 = arith.extui %12 : i1 to i32
    %c0_i32_8 = arith.constant 0 : i32
    %14 = arith.cmpi ne, %13, %c0_i32_8 : i32
    scf.if %14 {
      %c0_9 = arith.constant 0 : index
      %c0_10 = arith.constant 0 : index
      %15 = vector.load %arg6[%c0_9, %c0_10] : memref<128x128xf32, #tpu.memory_space<vmem>>, vector<128x128xf32>
      %c0_11 = arith.constant 0 : index
      %c0_12 = arith.constant 0 : index
      %16 = vector.load %arg4[%c0_11, %c0_12] : memref<1x128xf32, #tpu.memory_space<vmem>>, vector<1x128xf32>
      %17 = vector.broadcast %16 : vector<1x128xf32> to vector<128x128xf32>
      %18 = arith.addf %15, %17 : vector<128x128xf32>
      %cst_13 = arith.constant 0.000000e+00 : f32
      %19 = vector.broadcast %cst_13 : f32 to vector<128x128xf32>
      %20 = arith.subf %19, %18 : vector<128x128xf32>
      %21 = math.exp %20 : vector<128x128xf32>
      %cst_14 = arith.constant 1.000000e+00 : f32
      %22 = vector.broadcast %cst_14 : f32 to vector<128x128xf32>
      %23 = arith.addf %22, %21 : vector<128x128xf32>
      %24 = tpu.reciprocal %23 {approx = true} : vector<128x128xf32> -> vector<128x128xf32>
      %25 = arith.truncf %24 : vector<128x128xf32> to vector<128x128xbf16>
      %c0_15 = arith.constant 0 : index
      %c0_16 = arith.constant 0 : index
      %26 = vector.load %arg5[%c0_15, %c0_16] : memref<128x128xbf16, #tpu.memory_space<vmem>>, vector<128x128xbf16>
      tpu.vector_store %arg5[%c0_15, %c0_16], %25 {strides = array<i32>} : memref<128x128xbf16, #tpu.memory_space<vmem>>, vector<128x128xbf16>,
    } else {
    }
    return
  }
  func.func @transform_0(%arg0: i32, %arg1: i32) -> (i32, i32) {
    %c0_i32 = arith.constant 0 : i32
    return %arg0, %arg1 : i32, i32
  }
  func.func @transform_1(%arg0: i32, %arg1: i32) -> (i32, i32) {
    %c0_i32 = arith.constant 0 : i32
    %c0_i32_0 = arith.constant 0 : i32
    %c0_i32_1 = arith.constant 0 : i32
    return %c0_i32, %c0_i32_0 : i32, i32
  }
  func.func @transform_2(%arg0: i32, %arg1: i32) -> (i32, i32) {
    %c0_i32 = arith.constant 0 : i32
    %c0_i32_0 = arith.constant 0 : i32
    %c0_i32_1 = arith.constant 0 : i32
    return %c0_i32, %c0_i32_0 : i32, i32
  }
  func.func @transform_3(%arg0: i32, %arg1: i32) -> (i32, i32) {
    %c0_i32 = arith.constant 0 : i32
    %c0_i32_0 = arith.constant 0 : i32
    return %arg0, %c0_i32 : i32, i32
  }
}

</mosaic_0001>

<llo_original>
// kernel: net_forward.2
$region0: #{net_forward.2}
  #allocation0 [shape = 'u32[]', space=smem, size = 0x4, offset = 0x4, fixed_abs, tag = 'smem constant byte address 0x4 - core index']
  #allocation1 [shape = 'u32[144,128]{1,0:T(1,128)}', space=vmem, size = 0x12000, scoped, tag = 'internal scratch']
  #allocation2 [shape = 'f32[128,128]{1,0:T(8,128)}', space=vmem, size = 0x10000, scoped, tag = 'scratch operand']
  %s0 = inlined_call_operand.vmem [shape: bf16[128,128], index: 0, kind: input, shape index: {}]
  %s1 = inlined_call_operand.vmem [shape: bf16[128,128], index: 1, kind: input, shape index: {}]
  %s2 = inlined_call_operand.vmem [shape: f32[1,128], index: 2, kind: input, shape index: {}]
  %s3 = inlined_call_operand.vmem [shape: bf16[128,128], index: 3, kind: input, shape index: {}]
  %s4 = inlined_call_operand.vmem [shape: bf16[128,128], index: 4, kind: output, shape index: {0}]
  %s5 = inlined_call_operand.vmem [shape: bf16[128,128], index: 5, kind: output, shape index: {1}]
  %6 = xla_tuple %s4, %s5
  %s7 = sld [smem:[#allocation0]]
  $region42: #{net_forward.2} parent=0
    _
  %s9 = ssub.s32 1, %s7
  %s10 = scalar_select 0, %s9, %s7
  // Predicated region
  $region2: #{net_forward.2} parent=0 // pred_check
    _
  $region3: #{net_forward.2} parent=0 // pred_check_branch
    %12 = sbr.rel (0) target = $region5
  $region4: #{net_forward.2} parent=0 // pred_region
    _
  $region5: #{net_forward.2} parent=0 // pred_fallthru
    _
  // Predicated region
  $region6: #{net_forward.2} parent=0 // pred_check
    _
  $region7: #{net_forward.2} parent=0 // pred_check_branch
    %14 = sbr.rel (0) target = $region9
  $region8: #{net_forward.2} parent=0 // pred_region
    _
  $region9: #{net_forward.2} parent=0 // pred_fallthru
    _
  // Predicated region
  $region10: #{net_forward.2} parent=0 // pred_check
    _
  $region11: #{net_forward.2} parent=0 // pred_check_branch
    %16 = sbr.rel (0) target = $region13
  $region12: #{net_forward.2} parent=0 // pred_region
    _
  $region13: #{net_forward.2} parent=0 // pred_fallthru
    _
  // Predicated region
  $region14: #{net_forward.2} parent=0 // pred_check
    _
  $region15: #{net_forward.2} parent=0 // pred_check_branch
    %18 = sbr.rel (0) target = $region17
  $region16: #{net_forward.2} parent=0 // pred_region
    _
  $region17: #{net_forward.2} parent=0 // pred_fallthru
    _
  %p20 = scmp.eq.s32.totalorder 0, 0
  // Predicated region
  $region18: #{net_forward.2} parent=0 // pred_check
    %p21 = pneg %p20
  $region19: #{net_forward.2} parent=0 // pred_check_branch
    %23 = sbr.rel (%p21) target = $region21
  $region20: #{net_forward.2} parent=0 // pred_region
    %24 = vst [vmem:[#allocation2] sm:$0xff] 0.0
    %25 = vst [vmem:[#allocation2 + $0x8] sm:$0xff] 0.0
    %26 = vst [vmem:[#allocation2 + $0x10] sm:$0xff] 0.0
    %27 = vst [vmem:[#allocation2 + $0x18] sm:$0xff] 0.0
    %28 = vst [vmem:[#allocation2 + $0x20] sm:$0xff] 0.0
    %29 = vst [vmem:[#allocation2 + $0x28] sm:$0xff] 0.0
    %30 = vst [vmem:[#allocation2 + $0x30] sm:$0xff] 0.0
    %31 = vst [vmem:[#allocation2 + $0x38] sm:$0xff] 0.0
    %32 = vst [vmem:[#allocation2 + $0x40] sm:$0xff] 0.0
    %33 = vst [vmem:[#allocation2 + $0x48] sm:$0xff] 0.0
    %34 = vst [vmem:[#allocation2 + $0x50] sm:$0xff] 0.0
    %35 = vst [vmem:[#allocation2 + $0x58] sm:$0xff] 0.0
    %36 = vst [vmem:[#allocation2 + $0x60] sm:$0xff] 0.0
    %37 = vst [vmem:[#allocation2 + $0x68] sm:$0xff] 0.0
    %38 = vst [vmem:[#allocation2 + $0x70] sm:$0xff] 0.0
    %39 = vst [vmem:[#allocation2 + $0x78] sm:$0xff] 0.0
  $region21: #{net_forward.2} parent=0 // pred_fallthru
    _
  %s40 = smul.u32 0, 128
  %v41 = vld [vmem:[#allocation2] sm:$0xff]
  %v42 = vld [vmem:[#allocation2 + $0x8] sm:$0xff]
  %v43 = vld [vmem:[#allocation2 + $0x10] sm:$0xff]
  %v44 = vld [vmem:[#allocation2 + $0x18] sm:$0xff]
  %v45 = vld [vmem:[#allocation2 + $0x20] sm:$0xff]
  %v46 = vld [vmem:[#allocation2 + $0x28] sm:$0xff]
  %v47 = vld [vmem:[#allocation2 + $0x30] sm:$0xff]
  %v48 = vld [vmem:[#allocation2 + $0x38] sm:$0xff]
  %v49 = vld [vmem:[#allocation2 + $0x40] sm:$0xff]
  %v50 = vld [vmem:[#allocation2 + $0x48] sm:$0xff]
  %v51 = vld [vmem:[#allocation2 + $0x50] sm:$0xff]
  %v52 = vld [vmem:[#allocation2 + $0x58] sm:$0xff]
  %v53 = vld [vmem:[#allocation2 + $0x60] sm:$0xff]
  %v54 = vld [vmem:[#allocation2 + $0x68] sm:$0xff]
  %v55 = vld [vmem:[#allocation2 + $0x70] sm:$0xff]
  %v56 = vld [vmem:[#allocation2 + $0x78] sm:$0xff]
  %v57 = vld [vmem:[%s0] sm:$0xf]
  %v58 = vld [vmem:[%s0 + $0x4] sm:$0xf]
  %v59 = vld [vmem:[%s0 + $0x8] sm:$0xf]
  %v60 = vld [vmem:[%s0 + $0xc] sm:$0xf]
  %v61 = vld [vmem:[%s0 + $0x10] sm:$0xf]
  %v62 = vld [vmem:[%s0 + $0x14] sm:$0xf]
  %v63 = vld [vmem:[%s0 + $0x18] sm:$0xf]
  %v64 = vld [vmem:[%s0 + $0x1c] sm:$0xf]
  %v65 = vld [vmem:[%s0 + $0x20] sm:$0xf]
  %v66 = vld [vmem:[%s0 + $0x24] sm:$0xf]
  %v67 = vld [vmem:[%s0 + $0x28] sm:$0xf]
  %v68 = vld [vmem:[%s0 + $0x2c] sm:$0xf]
  %v69 = vld [vmem:[%s0 + $0x30] sm:$0xf]
  %v70 = vld [vmem:[%s0 + $0x34] sm:$0xf]
  %v71 = vld [vmem:[%s0 + $0x38] sm:$0xf]
  %v72 = vld [vmem:[%s0 + $0x3c] sm:$0xf]
  %s73 = sshra.s32 %s40, 3
  %s74 = sand.u32 %s40, 7
  %s75 = smul.addr %s73, 4
  %s76 = scalar_lea.vmem %s1, %s75
  %v77 = vld [vmem:[%s76] sm:$0xf]
  %v78 = vld [vmem:[%s76 + $0x4] sm:$0xf]
  %v79 = vld [vmem:[%s76 + $0x8] sm:$0xf]
  %v80 = vld [vmem:[%s76 + $0xc] sm:$0xf]
  %v81 = vld [vmem:[%s76 + $0x10] sm:$0xf]
  %v82 = vld [vmem:[%s76 + $0x14] sm:$0xf]
  %v83 = vld [vmem:[%s76 + $0x18] sm:$0xf]
  %v84 = vld [vmem:[%s76 + $0x1c] sm:$0xf]
  %v85 = vld [vmem:[%s76 + $0x20] sm:$0xf]
  %v86 = vld [vmem:[%s76 + $0x24] sm:$0xf]
  %v87 = vld [vmem:[%s76 + $0x28] sm:$0xf]
  %v88 = vld [vmem:[%s76 + $0x2c] sm:$0xf]
  %v89 = vld [vmem:[%s76 + $0x30] sm:$0xf]
  %v90 = vld [vmem:[%s76 + $0x34] sm:$0xf]
  %v91 = vld [vmem:[%s76 + $0x38] sm:$0xf]
  %v92 = vld [vmem:[%s76 + $0x3c] sm:$0xf]
  %v109 = vunpack.c.l.b16 %v57
  %v110 = vunpack.c.l.b16 %v58
  %v111 = vunpack.c.l.b16 %v59
  %v112 = vunpack.c.l.b16 %v60
  %v113 = vunpack.c.l.b16 %v61
  %v114 = vunpack.c.l.b16 %v62
  %v115 = vunpack.c.l.b16 %v63
  %v116 = vunpack.c.l.b16 %v64
  %v117 = vunpack.c.l.b16 %v65
  %v118 = vunpack.c.l.b16 %v66
  %v119 = vunpack.c.l.b16 %v67
  %v120 = vunpack.c.l.b16 %v68
  %v121 = vunpack.c.l.b16 %v69
  %v122 = vunpack.c.l.b16 %v70
  %v123 = vunpack.c.l.b16 %v71
  %v124 = vunpack.c.l.b16 %v72
  %v125 = vpack.c.b16 %v110, %v109
  %v126 = vpack.c.b16 %v112, %v111
  %v127 = vpack.c.b16 %v114, %v113
  %v128 = vpack.c.b16 %v116, %v115
  %v129 = vpack.c.b16 %v118, %v117
  %v130 = vpack.c.b16 %v120, %v119
  %v131 = vpack.c.b16 %v122, %v121
  %v132 = vpack.c.b16 %v124, %v123
  %v157 = vunpack.c.l.b16 %v77
  %v158 = vunpack.c.l.b16 %v78
  %v159 = vunpack.c.l.b16 %v79
  %v160 = vunpack.c.l.b16 %v80
  %v161 = vunpack.c.l.b16 %v81
  %v162 = vunpack.c.l.b16 %v82
  %v163 = vunpack.c.l.b16 %v83
  %v164 = vunpack.c.l.b16 %v84
  %v165 = vunpack.c.l.b16 %v85
  %v166 = vunpack.c.l.b16 %v86
  %v167 = vunpack.c.l.b16 %v87
  %v168 = vunpack.c.l.b16 %v88
  %v169 = vunpack.c.l.b16 %v89
  %v170 = vunpack.c.l.b16 %v90
  %v171 = vunpack.c.l.b16 %v91
  %v172 = vunpack.c.l.b16 %v92
  %v173 = vpack.c.b16 %v158, %v157
  %v174 = vpack.c.b16 %v160, %v159
  %v175 = vpack.c.b16 %v162, %v161
  %v176 = vpack.c.b16 %v164, %v163
  %v177 = vpack.c.b16 %v166, %v165
  %v178 = vpack.c.b16 %v168, %v167
  %v179 = vpack.c.b16 %v170, %v169
  %v180 = vpack.c.b16 %v172, %v171
  %189 = vmatprep.subr.bf16.mxu0 0
  %190 = vmatpush1.bf16.msra.mxu0 %v173
  %191 = vmatprep.subr.bf16.mxu0 0
  %192 = vmatpush1.bf16.msra.mxu0 %v174
  %193 = vmatprep.subr.bf16.mxu0 0
  %194 = vmatpush1.bf16.msra.mxu0 %v175
  %195 = vmatprep.subr.bf16.mxu0 0
  %196 = vmatpush1.bf16.msra.mxu0 %v176
  %197 = vmatprep.subr.bf16.mxu0 0
  %198 = vmatpush1.bf16.msra.mxu0 %v177
  %199 = vmatprep.subr.bf16.mxu0 0
  %200 = vmatpush1.bf16.msra.mxu0 %v178
  %201 = vmatprep.subr.bf16.mxu0 0
  %202 = vmatpush1.bf16.msra.mxu0 %v179
  %203 = vmatprep.subr.bf16.mxu0 0
  %204 = vmatpush1.bf16.msra.mxu0 %v180
  %205 = vmatprep.subr.bf16.mxu0 0
  %206 = vmatpush1.bf16.msra.mxu0 0
  %207 = vmatprep.subr.bf16.mxu0 0
  %208 = vmatpush1.bf16.msra.mxu0 0
  %209 = vmatprep.subr.bf16.mxu0 0
  %210 = vmatpush1.bf16.msra.mxu0 0
  %211 = vmatprep.subr.bf16.mxu0 0
  %212 = vmatpush1.bf16.msra.mxu0 0
  %213 = vmatprep.subr.bf16.mxu0 0
  %214 = vmatpush1.bf16.msra.mxu0 0
  %215 = vmatprep.subr.bf16.mxu0 0
  %216 = vmatpush1.bf16.msra.mxu0 0
  %217 = vmatprep.subr.bf16.mxu0 0
  %218 = vmatpush1.bf16.msra.mxu0 0
  %219 = vmatprep.subr.bf16.mxu0 0
  %220 = vmatpush1.bf16.msra.mxu0 0
  %221 = vmatprep.mubr.bf16.mxu0 0
  %222 = vmatmul.mubr.bf16.gmra.mrb[0].mxu0 %v125
  %v223 = vpop.f32.mrb[0].mxu0
  %v224 = vadd.f32 0.0, %v223
  %v225 = vpop.f32.mrb[0].mxu0
  %v226 = vpop.f32.mrb[0].mxu0
  %v227 = vadd.f32 0.0, %v226
  %v228 = vpop.f32.mrb[0].mxu0
  %229 = vmatprep.mubr.bf16.mxu0 0
  %230 = vmatmul.mubr.bf16.gmra.mrb[0].mxu0 %v126
  %v231 = vpop.f32.mrb[0].mxu0
  %v232 = vadd.f32 0.0, %v231
  %v233 = vpop.f32.mrb[0].mxu0
  %v234 = vpop.f32.mrb[0].mxu0
  %v235 = vadd.f32 0.0, %v234
  %v236 = vpop.f32.mrb[0].mxu0
  %237 = vmatprep.mubr.bf16.mxu0 0
  %238 = vmatmul.mubr.bf16.gmra.mrb[0].mxu0 %v127
  %v239 = vpop.f32.mrb[0].mxu0
  %v240 = vadd.f32 0.0, %v239
  %v241 = vpop.f32.mrb[0].mxu0
  %v242 = vpop.f32.mrb[0].mxu0
  %v243 = vadd.f32 0.0, %v242
  %v244 = vpop.f32.mrb[0].mxu0
  %245 = vmatprep.mubr.bf16.mxu0 0
  %246 = vmatmul.mubr.bf16.gmra.mrb[0].mxu0 %v128
  %v247 = vpop.f32.mrb[0].mxu0
  %v248 = vadd.f32 0.0, %v247
  %v249 = vpop.f32.mrb[0].mxu0
  %v250 = vpop.f32.mrb[0].mxu0
  %v251 = vadd.f32 0.0, %v250
  %v252 = vpop.f32.mrb[0].mxu0
  %253 = vmatprep.mubr.bf16.mxu0 0
  %254 = vmatmul.mubr.bf16.gmra.mrb[0].mxu0 %v129
  %v255 = vpop.f32.mrb[0].mxu0
  %v256 = vadd.f32 0.0, %v255
  %v257 = vpop.f32.mrb[0].mxu0
  %v258 = vpop.f32.mrb[0].mxu0
  %v259 = vadd.f32 0.0, %v258
  %v260 = vpop.f32.mrb[0].mxu0
  %261 = vmatprep.mubr.bf16.mxu0 0
  %262 = vmatmul.mubr.bf16.gmra.mrb[0].mxu0 %v130
  %v263 = vpop.f32.mrb[0].mxu0
  %v264 = vadd.f32 0.0, %v263
  %v265 = vpop.f32.mrb[0].mxu0
  %v266 = vpop.f32.mrb[0].mxu0
  %v267 = vadd.f32 0.0, %v266
  %v268 = vpop.f32.mrb[0].mxu0
  %269 = vmatprep.mubr.bf16.mxu0 0
  %270 = vmatmul.mubr.bf16.gmra.mrb[0].mxu0 %v131
  %v271 = vpop.f32.mrb[0].mxu0
  %v272 = vadd.f32 0.0, %v271
  %v273 = vpop.f32.mrb[0].mxu0
  %v274 = vpop.f32.mrb[0].mxu0
  %v275 = vadd.f32 0.0, %v274
  %v276 = vpop.f32.mrb[0].mxu0
  %277 = vmatprep.mubr.bf16.mxu0 0
  %278 = vmatmul.mubr.bf16.gmra.mrb[0].mxu0 %v132
  %v279 = vpop.f32.mrb[0].mxu0
  %v280 = vadd.f32 0.0, %v279
  %v281 = vpop.f32.mrb[0].mxu0
  %v282 = vpop.f32.mrb[0].mxu0
  %v283 = vadd.f32 0.0, %v282
  %v284 = vpop.f32.mrb[0].mxu0
  %285 = vdwg.mxu0
  %v286 = vadd.f32 %v41, %v224
  %v287 = vadd.f32 %v42, %v227
  %v288 = vadd.f32 %v43, %v232
  %v289 = vadd.f32 %v44, %v235
  %v290 = vadd.f32 %v45, %v240
  %v291 = vadd.f32 %v46, %v243
  %v292 = vadd.f32 %v47, %v248
  %v293 = vadd.f32 %v48, %v251
  %v294 = vadd.f32 %v49, %v256
  %v295 = vadd.f32 %v50, %v259
  %v296 = vadd.f32 %v51, %v264
  %v297 = vadd.f32 %v52, %v267
  %v298 = vadd.f32 %v53, %v272
  %v299 = vadd.f32 %v54, %v275
  %v300 = vadd.f32 %v55, %v280
  %v301 = vadd.f32 %v56, %v283
  %302 = vst [vmem:[#allocation2] sm:$0xff] %v286
  %303 = vst [vmem:[#allocation2 + $0x8] sm:$0xff] %v287
  %304 = vst [vmem:[#allocation2 + $0x10] sm:$0xff] %v288
  %305 = vst [vmem:[#allocation2 + $0x18] sm:$0xff] %v289
  %306 = vst [vmem:[#allocation2 + $0x20] sm:$0xff] %v290
  %307 = vst [vmem:[#allocation2 + $0x28] sm:$0xff] %v291
  %308 = vst [vmem:[#allocation2 + $0x30] sm:$0xff] %v292
  %309 = vst [vmem:[#allocation2 + $0x38] sm:$0xff] %v293
  %310 = vst [vmem:[#allocation2 + $0x40] sm:$0xff] %v294
  %311 = vst [vmem:[#allocation2 + $0x48] sm:$0xff] %v295
  %312 = vst [vmem:[#allocation2 + $0x50] sm:$0xff] %v296
  %313 = vst [vmem:[#allocation2 + $0x58] sm:$0xff] %v297
  %314 = vst [vmem:[#allocation2 + $0x60] sm:$0xff] %v298
  %315 = vst [vmem:[#allocation2 + $0x68] sm:$0xff] %v299
  %316 = vst [vmem:[#allocation2 + $0x70] sm:$0xff] %v300
  %317 = vst [vmem:[#allocation2 + $0x78] sm:$0xff] %v301
  // Predicated region
  $region22: #{net_forward.2} parent=0 // pred_check
    %p318 = pneg %p20
  $region23: #{net_forward.2} parent=0 // pred_check_branch
    %320 = sbr.rel (%p318) target = $region25
  $region24: #{net_forward.2} parent=0 // pred_region
    %v321 = vld [vmem:[#allocation2] sm:$0xff]
    %v322 = vld [vmem:[#allocation2 + $0x8] sm:$0xff]
    %v323 = vld [vmem:[#allocation2 + $0x10] sm:$0xff]
    %v324 = vld [vmem:[#allocation2 + $0x18] sm:$0xff]
    %v325 = vld [vmem:[#allocation2 + $0x20] sm:$0xff]
    %v326 = vld [vmem:[#allocation2 + $0x28] sm:$0xff]
    %v327 = vld [vmem:[#allocation2 + $0x30] sm:$0xff]
    %v328 = vld [vmem:[#allocation2 + $0x38] sm:$0xff]
    %v329 = vld [vmem:[#allocation2 + $0x40] sm:$0xff]
    %v330 = vld [vmem:[#allocation2 + $0x48] sm:$0xff]
    %v331 = vld [vmem:[#allocation2 + $0x50] sm:$0xff]
    %v332 = vld [vmem:[#allocation2 + $0x58] sm:$0xff]
    %v333 = vld [vmem:[#allocation2 + $0x60] sm:$0xff]
    %v334 = vld [vmem:[#allocation2 + $0x68] sm:$0xff]
    %v335 = vld [vmem:[#allocation2 + $0x70] sm:$0xff]
    %v336 = vld [vmem:[#allocation2 + $0x78] sm:$0xff]
    %v337 = vld [vmem:[%s2] sm:$0x1]
    %v339 = vlaneseq
    %v340 = vshrl.u32 %v339, 7
    %v341 = vsub.s32 0, %v340
    %v342 = vrot.slane %v337, %v341
    %v344 = vadd.f32 %v321, %v342
    %v345 = vadd.f32 %v322, %v342
    %v346 = vadd.f32 %v323, %v342
    %v347 = vadd.f32 %v324, %v342
    %v348 = vadd.f32 %v325, %v342
    %v349 = vadd.f32 %v326, %v342
    %v350 = vadd.f32 %v327, %v342
    %v351 = vadd.f32 %v328, %v342
    %v352 = vadd.f32 %v329, %v342
    %v353 = vadd.f32 %v330, %v342
    %v354 = vadd.f32 %v331, %v342
    %v355 = vadd.f32 %v332, %v342
    %v356 = vadd.f32 %v333, %v342
    %v357 = vadd.f32 %v334, %v342
    %v358 = vadd.f32 %v335, %v342
    %v359 = vadd.f32 %v336, %v342
    %vm360 = vcmp.gt.f32.partialorder %v344, 0.0
    %vm361 = vcmp.gt.f32.partialorder %v345, 0.0
    %vm362 = vcmp.gt.f32.partialorder %v346, 0.0
    %vm363 = vcmp.gt.f32.partialorder %v347, 0.0
    %vm364 = vcmp.gt.f32.partialorder %v348, 0.0
    %vm365 = vcmp.gt.f32.partialorder %v349, 0.0
    %vm366 = vcmp.gt.f32.partialorder %v350, 0.0
    %vm367 = vcmp.gt.f32.partialorder %v351, 0.0
    %vm368 = vcmp.gt.f32.partialorder %v352, 0.0
    %vm369 = vcmp.gt.f32.partialorder %v353, 0.0
    %vm370 = vcmp.gt.f32.partialorder %v354, 0.0
    %vm371 = vcmp.gt.f32.partialorder %v355, 0.0
    %vm372 = vcmp.gt.f32.partialorder %v356, 0.0
    %vm373 = vcmp.gt.f32.partialorder %v357, 0.0
    %vm374 = vcmp.gt.f32.partialorder %v358, 0.0
    %vm375 = vcmp.gt.f32.partialorder %v359, 0.0
    %v376 = vmin.f32 %v344, 0.0
    %v377 = vmin.f32 %v345, 0.0
    %v378 = vmin.f32 %v346, 0.0
    %v379 = vmin.f32 %v347, 0.0
    %v380 = vmin.f32 %v348, 0.0
    %v381 = vmin.f32 %v349, 0.0
    %v382 = vmin.f32 %v350, 0.0
    %v383 = vmin.f32 %v351, 0.0
    %v384 = vmin.f32 %v352, 0.0
    %v385 = vmin.f32 %v353, 0.0
    %v386 = vmin.f32 %v354, 0.0
    %v387 = vmin.f32 %v355, 0.0
    %v388 = vmin.f32 %v356, 0.0
    %v389 = vmin.f32 %v357, 0.0
    %v390 = vmin.f32 %v358, 0.0
    %v391 = vmin.f32 %v359, 0.0
    %v392 = vmul.f32 %v376, 1.442695
    %v393 = vpow.pop %v392
    %v394 = vmul.f32 %v377, 1.442695
    %v395 = vpow.pop %v394
    %v396 = vmul.f32 %v378, 1.442695
    %v397 = vpow.pop %v396
    %v398 = vmul.f32 %v379, 1.442695
    %v399 = vpow.pop %v398
    %v400 = vmul.f32 %v380, 1.442695
    %v401 = vpow.pop %v400
    %v402 = vmul.f32 %v381, 1.442695
    %v403 = vpow.pop %v402
    %v404 = vmul.f32 %v382, 1.442695
    %v405 = vpow.pop %v404
    %v406 = vmul.f32 %v383, 1.442695
    %v407 = vpow.pop %v406
    %v408 = vmul.f32 %v384, 1.442695
    %v409 = vpow.pop %v408
    %v410 = vmul.f32 %v385, 1.442695
    %v411 = vpow.pop %v410
    %v412 = vmul.f32 %v386, 1.442695
    %v413 = vpow.pop %v412
    %v414 = vmul.f32 %v387, 1.442695
    %v415 = vpow.pop %v414
    %v416 = vmul.f32 %v388, 1.442695
    %v417 = vpow.pop %v416
    %v418 = vmul.f32 %v389, 1.442695
    %v419 = vpow.pop %v418
    %v420 = vmul.f32 %v390, 1.442695
    %v421 = vpow.pop %v420
    %v422 = vmul.f32 %v391, 1.442695
    %v423 = vpow.pop %v422
    %v424 = vsub.f32 %v393, 1.0
    %v425 = vsub.f32 %v395, 1.0
    %v426 = vsub.f32 %v397, 1.0
    %v427 = vsub.f32 %v399, 1.0
    %v428 = vsub.f32 %v401, 1.0
    %v429 = vsub.f32 %v403, 1.0
    %v430 = vsub.f32 %v405, 1.0
    %v431 = vsub.f32 %v407, 1.0
    %v432 = vsub.f32 %v409, 1.0
    %v433 = vsub.f32 %v411, 1.0
    %v434 = vsub.f32 %v413, 1.0
    %v435 = vsub.f32 %v415, 1.0
    %v436 = vsub.f32 %v417, 1.0
    %v437 = vsub.f32 %v419, 1.0
    %v438 = vsub.f32 %v421, 1.0
    %v439 = vsub.f32 %v423, 1.0
    %v440 = vsel %vm360, %v344, %v424
    %v441 = vsel %vm361, %v345, %v425
    %v442 = vsel %vm362, %v346, %v426
    %v443 = vsel %vm363, %v347, %v427
    %v444 = vsel %vm364, %v348, %v428
    %v445 = vsel %vm365, %v349, %v429
    %v446 = vsel %vm366, %v350, %v430
    %v447 = vsel %vm367, %v351, %v431
    %v448 = vsel %vm368, %v352, %v432
    %v449 = vsel %vm369, %v353, %v433
    %v450 = vsel %vm370, %v354, %v434
    %v451 = vsel %vm371, %v355, %v435
    %v452 = vsel %vm372, %v356, %v436
    %v453 = vsel %vm373, %v357, %v437
    %v454 = vsel %vm374, %v358, %v438
    %v455 = vsel %vm375, %v359, %v439
    %v456 = vpack.c.bf16 %v441, %v440
    %v457 = vpack.c.bf16 %v443, %v442
    %v458 = vpack.c.bf16 %v445, %v444
    %v459 = vpack.c.bf16 %v447, %v446
    %v460 = vpack.c.bf16 %v449, %v448
    %v461 = vpack.c.bf16 %v451, %v450
    %v462 = vpack.c.bf16 %v453, %v452
    %v463 = vpack.c.bf16 %v455, %v454
    %v472 = vunpack.c.l.b16 %v456
    %v473 = vunpack.c.h.b16 %v456
    %v474 = vunpack.c.l.b16 %v457
    %v475 = vunpack.c.h.b16 %v457
    %v476 = vunpack.c.l.b16 %v458
    %v477 = vunpack.c.h.b16 %v458
    %v478 = vunpack.c.l.b16 %v459
    %v479 = vunpack.c.h.b16 %v459
    %v480 = vunpack.c.l.b16 %v460
    %v481 = vunpack.c.h.b16 %v460
    %v482 = vunpack.c.l.b16 %v461
    %v483 = vunpack.c.h.b16 %v461
    %v484 = vunpack.c.l.b16 %v462
    %v485 = vunpack.c.h.b16 %v462
    %v486 = vunpack.c.l.b16 %v463
    %v487 = vunpack.c.h.b16 %v463
    %v488 = vpack.c.b16 %v472, %v472
    %v489 = vpack.c.b16 %v473, %v473
    %v490 = vpack.c.b16 %v474, %v474
    %v491 = vpack.c.b16 %v475, %v475
    %v492 = vpack.c.b16 %v476, %v476
    %v493 = vpack.c.b16 %v477, %v477
    %v494 = vpack.c.b16 %v478, %v478
    %v495 = vpack.c.b16 %v479, %v479
    %v496 = vpack.c.b16 %v480, %v480
    %v497 = vpack.c.b16 %v481, %v481
    %v498 = vpack.c.b16 %v482, %v482
    %v499 = vpack.c.b16 %v483, %v483
    %v500 = vpack.c.b16 %v484, %v484
    %v501 = vpack.c.b16 %v485, %v485
    %v502 = vpack.c.b16 %v486, %v486
    %v503 = vpack.c.b16 %v487, %v487
    %520 = vst [vmem:[%s4] sm:$0xf] %v488
    %521 = vst [vmem:[%s4 + $0x4] sm:$0xf] %v489
    %522 = vst [vmem:[%s4 + $0x8] sm:$0xf] %v490
    %523 = vst [vmem:[%s4 + $0xc] sm:$0xf] %v491
    %524 = vst [vmem:[%s4 + $0x10] sm:$0xf] %v492
    %525 = vst [vmem:[%s4 + $0x14] sm:$0xf] %v493
    %526 = vst [vmem:[%s4 + $0x18] sm:$0xf] %v494
    %527 = vst [vmem:[%s4 + $0x1c] sm:$0xf] %v495
    %528 = vst [vmem:[%s4 + $0x20] sm:$0xf] %v496
    %529 = vst [vmem:[%s4 + $0x24] sm:$0xf] %v497
    %530 = vst [vmem:[%s4 + $0x28] sm:$0xf] %v498
    %531 = vst [vmem:[%s4 + $0x2c] sm:$0xf] %v499
    %532 = vst [vmem:[%s4 + $0x30] sm:$0xf] %v500
    %533 = vst [vmem:[%s4 + $0x34] sm:$0xf] %v501
    %534 = vst [vmem:[%s4 + $0x38] sm:$0xf] %v502
    %535 = vst [vmem:[%s4 + $0x3c] sm:$0xf] %v503
    %v536 = vld [vmem:[%s3] sm:$0xf]
    %v537 = vld [vmem:[%s3 + $0x4] sm:$0xf]
    %v538 = vld [vmem:[%s3 + $0x8] sm:$0xf]
    %v539 = vld [vmem:[%s3 + $0xc] sm:$0xf]
    %v540 = vld [vmem:[%s3 + $0x10] sm:$0xf]
    %v541 = vld [vmem:[%s3 + $0x14] sm:$0xf]
    %v542 = vld [vmem:[%s3 + $0x18] sm:$0xf]
    %v543 = vld [vmem:[%s3 + $0x1c] sm:$0xf]
    %v544 = vld [vmem:[%s3 + $0x20] sm:$0xf]
    %v545 = vld [vmem:[%s3 + $0x24] sm:$0xf]
    %v546 = vld [vmem:[%s3 + $0x28] sm:$0xf]
    %v547 = vld [vmem:[%s3 + $0x2c] sm:$0xf]
    %v548 = vld [vmem:[%s3 + $0x30] sm:$0xf]
    %v549 = vld [vmem:[%s3 + $0x34] sm:$0xf]
    %v550 = vld [vmem:[%s3 + $0x38] sm:$0xf]
    %v551 = vld [vmem:[%s3 + $0x3c] sm:$0xf]
    %v568 = vunpack.c.l.b16 %v536
    %v569 = vunpack.c.l.b16 %v537
    %v570 = vunpack.c.l.b16 %v538
    %v571 = vunpack.c.l.b16 %v539
    %v572 = vunpack.c.l.b16 %v540
    %v573 = vunpack.c.l.b16 %v541
    %v574 = vunpack.c.l.b16 %v542
    %v575 = vunpack.c.l.b16 %v543
    %v576 = vunpack.c.l.b16 %v544
    %v577 = vunpack.c.l.b16 %v545
    %v578 = vunpack.c.l.b16 %v546
    %v579 = vunpack.c.l.b16 %v547
    %v580 = vunpack.c.l.b16 %v548
    %v581 = vunpack.c.l.b16 %v549
    %v582 = vunpack.c.l.b16 %v550
    %v583 = vunpack.c.l.b16 %v551
    %v584 = vpack.c.b16 %v569, %v568
    %v585 = vpack.c.b16 %v571, %v570
    %v586 = vpack.c.b16 %v573, %v572
    %v587 = vpack.c.b16 %v575, %v574
    %v588 = vpack.c.b16 %v577, %v576
    %v589 = vpack.c.b16 %v579, %v578
    %v590 = vpack.c.b16 %v581, %v580
    %v591 = vpack.c.b16 %v583, %v582
    %600 = vmatprep.subr.bf16.mxu0 0
    %601 = vmatpush1.bf16.msra.mxu0 %v584
    %602 = vmatprep.subr.bf16.mxu0 0
    %603 = vmatpush1.bf16.msra.mxu0 %v585
    %604 = vmatprep.subr.bf16.mxu0 0
    %605 = vmatpush1.bf16.msra.mxu0 %v586
    %606 = vmatprep.subr.bf16.mxu0 0
    %607 = vmatpush1.bf16.msra.mxu0 %v587
    %608 = vmatprep.subr.bf16.mxu0 0
    %609 = vmatpush1.bf16.msra.mxu0 %v588
    %610 = vmatprep.subr.bf16.mxu0 0
    %611 = vmatpush1.bf16.msra.mxu0 %v589
    %612 = vmatprep.subr.bf16.mxu0 0
    %613 = vmatpush1.bf16.msra.mxu0 %v590
    %614 = vmatprep.subr.bf16.mxu0 0
    %615 = vmatpush1.bf16.msra.mxu0 %v591
    %616 = vmatprep.subr.bf16.mxu0 0
    %617 = vmatpush1.bf16.msra.mxu0 0
    %618 = vmatprep.subr.bf16.mxu0 0
    %619 = vmatpush1.bf16.msra.mxu0 0
    %620 = vmatprep.subr.bf16.mxu0 0
    %621 = vmatpush1.bf16.msra.mxu0 0
    %622 = vmatprep.subr.bf16.mxu0 0
    %623 = vmatpush1.bf16.msra.mxu0 0
    %624 = vmatprep.subr.bf16.mxu0 0
    %625 = vmatpush1.bf16.msra.mxu0 0
    %626 = vmatprep.subr.bf16.mxu0 0
    %627 = vmatpush1.bf16.msra.mxu0 0
    %628 = vmatprep.subr.bf16.mxu0 0
    %629 = vmatpush1.bf16.msra.mxu0 0
    %630 = vmatprep.subr.bf16.mxu0 0
    %631 = vmatpush1.bf16.msra.mxu0 0
    %632 = vmatprep.mubr.bf16.mxu0 0
    %633 = vmatmul.mubr.bf16.gmra.mrb[0].mxu0 %v456
    %v634 = vpop.f32.mrb[0].mxu0
    %v635 = vadd.f32 0.0, %v634
    %v636 = vpop.f32.mrb[0].mxu0
    %v637 = vpop.f32.mrb[0].mxu0
    %v638 = vadd.f32 0.0, %v637
    %v639 = vpop.f32.mrb[0].mxu0
    %640 = vmatprep.mubr.bf16.mxu0 0
    %641 = vmatmul.mubr.bf16.gmra.mrb[0].mxu0 %v457
    %v642 = vpop.f32.mrb[0].mxu0
    %v643 = vadd.f32 0.0, %v642
    %v644 = vpop.f32.mrb[0].mxu0
    %v645 = vpop.f32.mrb[0].mxu0
    %v646 = vadd.f32 0.0, %v645
    %v647 = vpop.f32.mrb[0].mxu0
    %648 = vmatprep.mubr.bf16.mxu0 0
    %649 = vmatmul.mubr.bf16.gmra.mrb[0].mxu0 %v458
    %v650 = vpop.f32.mrb[0].mxu0
    %v651 = vadd.f32 0.0, %v650
    %v652 = vpop.f32.mrb[0].mxu0
    %v653 = vpop.f32.mrb[0].mxu0
    %v654 = vadd.f32 0.0, %v653
    %v655 = vpop.f32.mrb[0].mxu0
    %656 = vmatprep.mubr.bf16.mxu0 0
    %657 = vmatmul.mubr.bf16.gmra.mrb[0].mxu0 %v459
    %v658 = vpop.f32.mrb[0].mxu0
    %v659 = vadd.f32 0.0, %v658
    %v660 = vpop.f32.mrb[0].mxu0
    %v661 = vpop.f32.mrb[0].mxu0
    %v662 = vadd.f32 0.0, %v661
    %v663 = vpop.f32.mrb[0].mxu0
    %664 = vmatprep.mubr.bf16.mxu0 0
    %665 = vmatmul.mubr.bf16.gmra.mrb[0].mxu0 %v460
    %v666 = vpop.f32.mrb[0].mxu0
    %v667 = vadd.f32 0.0, %v666
    %v668 = vpop.f32.mrb[0].mxu0
    %v669 = vpop.f32.mrb[0].mxu0
    %v670 = vadd.f32 0.0, %v669
    %v671 = vpop.f32.mrb[0].mxu0
    %672 = vmatprep.mubr.bf16.mxu0 0
    %673 = vmatmul.mubr.bf16.gmra.mrb[0].mxu0 %v461
    %v674 = vpop.f32.mrb[0].mxu0
    %v675 = vadd.f32 0.0, %v674
    %v676 = vpop.f32.mrb[0].mxu0
    %v677 = vpop.f32.mrb[0].mxu0
    %v678 = vadd.f32 0.0, %v677
    %v679 = vpop.f32.mrb[0].mxu0
    %680 = vmatprep.mubr.bf16.mxu0 0
    %681 = vmatmul.mubr.bf16.gmra.mrb[0].mxu0 %v462
    %v682 = vpop.f32.mrb[0].mxu0
    %v683 = vadd.f32 0.0, %v682
    %v684 = vpop.f32.mrb[0].mxu0
    %v685 = vpop.f32.mrb[0].mxu0
    %v686 = vadd.f32 0.0, %v685
    %v687 = vpop.f32.mrb[0].mxu0
    %688 = vmatprep.mubr.bf16.mxu0 0
    %689 = vmatmul.mubr.bf16.gmra.mrb[0].mxu0 %v463
    %v690 = vpop.f32.mrb[0].mxu0
    %v691 = vadd.f32 0.0, %v690
    %v692 = vpop.f32.mrb[0].mxu0
    %v693 = vpop.f32.mrb[0].mxu0
    %v694 = vadd.f32 0.0, %v693
    %v695 = vpop.f32.mrb[0].mxu0
    %696 = vdwg.mxu0
    %v697 = vpack.c.bf16 %v638, %v635
    %v698 = vpack.c.bf16 %v646, %v643
    %v699 = vpack.c.bf16 %v654, %v651
    %v700 = vpack.c.bf16 %v662, %v659
    %v701 = vpack.c.bf16 %v670, %v667
    %v702 = vpack.c.bf16 %v678, %v675
    %v703 = vpack.c.bf16 %v686, %v683
    %v704 = vpack.c.bf16 %v694, %v691
    %v713 = vunpack.c.l.b16 %v697
    %v714 = vunpack.c.h.b16 %v697
    %v715 = vunpack.c.l.b16 %v698
    %v716 = vunpack.c.h.b16 %v698
    %v717 = vunpack.c.l.b16 %v699
    %v718 = vunpack.c.h.b16 %v699
    %v719 = vunpack.c.l.b16 %v700
    %v720 = vunpack.c.h.b16 %v700
    %v721 = vunpack.c.l.b16 %v701
    %v722 = vunpack.c.h.b16 %v701
    %v723 = vunpack.c.l.b16 %v702
    %v724 = vunpack.c.h.b16 %v702
    %v725 = vunpack.c.l.b16 %v703
    %v726 = vunpack.c.h.b16 %v703
    %v727 = vunpack.c.l.b16 %v704
    %v728 = vunpack.c.h.b16 %v704
    %v729 = vpack.c.b16 %v713, %v713
    %v730 = vpack.c.b16 %v714, %v714
    %v731 = vpack.c.b16 %v715, %v715
    %v732 = vpack.c.b16 %v716, %v716
    %v733 = vpack.c.b16 %v717, %v717
    %v734 = vpack.c.b16 %v718, %v718
    %v735 = vpack.c.b16 %v719, %v719
    %v736 = vpack.c.b16 %v720, %v720
    %v737 = vpack.c.b16 %v721, %v721
    %v738 = vpack.c.b16 %v722, %v722
    %v739 = vpack.c.b16 %v723, %v723
    %v740 = vpack.c.b16 %v724, %v724
    %v741 = vpack.c.b16 %v725, %v725
    %v742 = vpack.c.b16 %v726, %v726
    %v743 = vpack.c.b16 %v727, %v727
    %v744 = vpack.c.b16 %v728, %v728
    %761 = vst [vmem:[%s5] sm:$0xf] %v729
    %762 = vst [vmem:[%s5 + $0x4] sm:$0xf] %v730
    %763 = vst [vmem:[%s5 + $0x8] sm:$0xf] %v731
    %764 = vst [vmem:[%s5 + $0xc] sm:$0xf] %v732
    %765 = vst [vmem:[%s5 + $0x10] sm:$0xf] %v733
    %766 = vst [vmem:[%s5 + $0x14] sm:$0xf] %v734
    %767 = vst [vmem:[%s5 + $0x18] sm:$0xf] %v735
    %768 = vst [vmem:[%s5 + $0x1c] sm:$0xf] %v736
    %769 = vst [vmem:[%s5 + $0x20] sm:$0xf] %v737
    %770 = vst [vmem:[%s5 + $0x24] sm:$0xf] %v738
    %771 = vst [vmem:[%s5 + $0x28] sm:$0xf] %v739
    %772 = vst [vmem:[%s5 + $0x2c] sm:$0xf] %v740
    %773 = vst [vmem:[%s5 + $0x30] sm:$0xf] %v741
    %774 = vst [vmem:[%s5 + $0x34] sm:$0xf] %v742
    %775 = vst [vmem:[%s5 + $0x38] sm:$0xf] %v743
    %776 = vst [vmem:[%s5 + $0x3c] sm:$0xf] %v744
  $region25: #{net_forward.2} parent=0 // pred_fallthru
    _
  // Predicated region
  $region26: #{net_forward.2} parent=0 // pred_check
    _
  $region27: #{net_forward.2} parent=0 // pred_check_branch
    %778 = sbr.rel (0) target = $region29
  $region28: #{net_forward.2} parent=0 // pred_region
    _
  $region29: #{net_forward.2} parent=0 // pred_fallthru
    _
  // Predicated region
  $region30: #{net_forward.2} parent=0 // pred_check
    _
  $region31: #{net_forward.2} parent=0 // pred_check_branch
    %780 = sbr.rel (0) target = $region33
  $region32: #{net_forward.2} parent=0 // pred_region
    _
  $region33: #{net_forward.2} parent=0 // pred_fallthru
    _
  // Predicated region
  $region34: #{net_forward.2} parent=0 // pred_check
    _
  $region35: #{net_forward.2} parent=0 // pred_check_branch
    %782 = sbr.rel (0) target = $region37
  $region36: #{net_forward.2} parent=0 // pred_region
    _
  $region37: #{net_forward.2} parent=0 // pred_fallthru
    _
  // Predicated region
  $region38: #{net_forward.2} parent=0 // pred_check
    _
  $region39: #{net_forward.2} parent=0 // pred_check_branch
    %784 = sbr.rel (0) target = $region41
  $region40: #{net_forward.2} parent=0 // pred_region
    _
  $region41: #{net_forward.2} parent=0 // pred_fallthru
    _

// kernel: net_forward.3
$region0: #{net_forward.3}
  #allocation0 [shape = 'u32[]', space=smem, size = 0x4, offset = 0x4, fixed_abs, tag = 'smem constant byte address 0x4 - core index']
  #allocation1 [shape = 'u32[144,128]{1,0:T(1,128)}', space=vmem, size = 0x12000, scoped, tag = 'internal scratch']
  #allocation2 [shape = 'f32[128,128]{1,0:T(8,128)}', space=vmem, size = 0x10000, scoped, tag = 'scratch operand']
  %s0 = inlined_call_operand.vmem [shape: bf16[128,128], index: 0, kind: input, shape index: {}]
  %s1 = inlined_call_operand.vmem [shape: bf16[128,128], index: 1, kind: input, shape index: {}]
  %s2 = inlined_call_operand.vmem [shape: f32[1,128], index: 2, kind: input, shape index: {}]
  %s3 = inlined_call_operand.vmem [shape: bf16[128,128], index: 3, kind: output, shape index: {}]
  %s4 = sld [smem:[#allocation0]]
  $region30: #{net_forward.3} parent=0
    _
  %s6 = ssub.s32 1, %s4
  %s7 = scalar_select 0, %s6, %s4
  // Predicated region
  $region2: #{net_forward.3} parent=0 // pred_check
    _
  $region3: #{net_forward.3} parent=0 // pred_check_branch
    %9 = sbr.rel (0) target = $region5
  $region4: #{net_forward.3} parent=0 // pred_region
    _
  $region5: #{net_forward.3} parent=0 // pred_fallthru
    _
  // Predicated region
  $region6: #{net_forward.3} parent=0 // pred_check
    _
  $region7: #{net_forward.3} parent=0 // pred_check_branch
    %11 = sbr.rel (0) target = $region9
  $region8: #{net_forward.3} parent=0 // pred_region
    _
  $region9: #{net_forward.3} parent=0 // pred_fallthru
    _
  // Predicated region
  $region10: #{net_forward.3} parent=0 // pred_check
    _
  $region11: #{net_forward.3} parent=0 // pred_check_branch
    %13 = sbr.rel (0) target = $region13
  $region12: #{net_forward.3} parent=0 // pred_region
    _
  $region13: #{net_forward.3} parent=0 // pred_fallthru
    _
  %p15 = scmp.eq.s32.totalorder 0, 0
  // Predicated region
  $region14: #{net_forward.3} parent=0 // pred_check
    %p16 = pneg %p15
  $region15: #{net_forward.3} parent=0 // pred_check_branch
    %18 = sbr.rel (%p16) target = $region17
  $region16: #{net_forward.3} parent=0 // pred_region
    %19 = vst [vmem:[#allocation2] sm:$0xff] 0.0
    %20 = vst [vmem:[#allocation2 + $0x8] sm:$0xff] 0.0
    %21 = vst [vmem:[#allocation2 + $0x10] sm:$0xff] 0.0
    %22 = vst [vmem:[#allocation2 + $0x18] sm:$0xff] 0.0
    %23 = vst [vmem:[#allocation2 + $0x20] sm:$0xff] 0.0
    %24 = vst [vmem:[#allocation2 + $0x28] sm:$0xff] 0.0
    %25 = vst [vmem:[#allocation2 + $0x30] sm:$0xff] 0.0
    %26 = vst [vmem:[#allocation2 + $0x38] sm:$0xff] 0.0
    %27 = vst [vmem:[#allocation2 + $0x40] sm:$0xff] 0.0
    %28 = vst [vmem:[#allocation2 + $0x48] sm:$0xff] 0.0
    %29 = vst [vmem:[#allocation2 + $0x50] sm:$0xff] 0.0
    %30 = vst [vmem:[#allocation2 + $0x58] sm:$0xff] 0.0
    %31 = vst [vmem:[#allocation2 + $0x60] sm:$0xff] 0.0
    %32 = vst [vmem:[#allocation2 + $0x68] sm:$0xff] 0.0
    %33 = vst [vmem:[#allocation2 + $0x70] sm:$0xff] 0.0
    %34 = vst [vmem:[#allocation2 + $0x78] sm:$0xff] 0.0
  $region17: #{net_forward.3} parent=0 // pred_fallthru
    _
  %s35 = smul.u32 0, 128
  %v36 = vld [vmem:[#allocation2] sm:$0xff]
  %v37 = vld [vmem:[#allocation2 + $0x8] sm:$0xff]
  %v38 = vld [vmem:[#allocation2 + $0x10] sm:$0xff]
  %v39 = vld [vmem:[#allocation2 + $0x18] sm:$0xff]
  %v40 = vld [vmem:[#allocation2 + $0x20] sm:$0xff]
  %v41 = vld [vmem:[#allocation2 + $0x28] sm:$0xff]
  %v42 = vld [vmem:[#allocation2 + $0x30] sm:$0xff]
  %v43 = vld [vmem:[#allocation2 + $0x38] sm:$0xff]
  %v44 = vld [vmem:[#allocation2 + $0x40] sm:$0xff]
  %v45 = vld [vmem:[#allocation2 + $0x48] sm:$0xff]
  %v46 = vld [vmem:[#allocation2 + $0x50] sm:$0xff]
  %v47 = vld [vmem:[#allocation2 + $0x58] sm:$0xff]
  %v48 = vld [vmem:[#allocation2 + $0x60] sm:$0xff]
  %v49 = vld [vmem:[#allocation2 + $0x68] sm:$0xff]
  %v50 = vld [vmem:[#allocation2 + $0x70] sm:$0xff]
  %v51 = vld [vmem:[#allocation2 + $0x78] sm:$0xff]
  %v52 = vld [vmem:[%s0] sm:$0xf]
  %v53 = vld [vmem:[%s0 + $0x4] sm:$0xf]
  %v54 = vld [vmem:[%s0 + $0x8] sm:$0xf]
  %v55 = vld [vmem:[%s0 + $0xc] sm:$0xf]
  %v56 = vld [vmem:[%s0 + $0x10] sm:$0xf]
  %v57 = vld [vmem:[%s0 + $0x14] sm:$0xf]
  %v58 = vld [vmem:[%s0 + $0x18] sm:$0xf]
  %v59 = vld [vmem:[%s0 + $0x1c] sm:$0xf]
  %v60 = vld [vmem:[%s0 + $0x20] sm:$0xf]
  %v61 = vld [vmem:[%s0 + $0x24] sm:$0xf]
  %v62 = vld [vmem:[%s0 + $0x28] sm:$0xf]
  %v63 = vld [vmem:[%s0 + $0x2c] sm:$0xf]
  %v64 = vld [vmem:[%s0 + $0x30] sm:$0xf]
  %v65 = vld [vmem:[%s0 + $0x34] sm:$0xf]
  %v66 = vld [vmem:[%s0 + $0x38] sm:$0xf]
  %v67 = vld [vmem:[%s0 + $0x3c] sm:$0xf]
  %s68 = sshra.s32 %s35, 3
  %s69 = sand.u32 %s35, 7
  %s70 = smul.addr %s68, 4
  %s71 = scalar_lea.vmem %s1, %s70
  %v72 = vld [vmem:[%s71] sm:$0xf]
  %v73 = vld [vmem:[%s71 + $0x4] sm:$0xf]
  %v74 = vld [vmem:[%s71 + $0x8] sm:$0xf]
  %v75 = vld [vmem:[%s71 + $0xc] sm:$0xf]
  %v76 = vld [vmem:[%s71 + $0x10] sm:$0xf]
  %v77 = vld [vmem:[%s71 + $0x14] sm:$0xf]
  %v78 = vld [vmem:[%s71 + $0x18] sm:$0xf]
  %v79 = vld [vmem:[%s71 + $0x1c] sm:$0xf]
  %v80 = vld [vmem:[%s71 + $0x20] sm:$0xf]
  %v81 = vld [vmem:[%s71 + $0x24] sm:$0xf]
  %v82 = vld [vmem:[%s71 + $0x28] sm:$0xf]
  %v83 = vld [vmem:[%s71 + $0x2c] sm:$0xf]
  %v84 = vld [vmem:[%s71 + $0x30] sm:$0xf]
  %v85 = vld [vmem:[%s71 + $0x34] sm:$0xf]
  %v86 = vld [vmem:[%s71 + $0x38] sm:$0xf]
  %v87 = vld [vmem:[%s71 + $0x3c] sm:$0xf]
  %v104 = vunpack.c.l.b16 %v52
  %v105 = vunpack.c.l.b16 %v53
  %v106 = vunpack.c.l.b16 %v54
  %v107 = vunpack.c.l.b16 %v55
  %v108 = vunpack.c.l.b16 %v56
  %v109 = vunpack.c.l.b16 %v57
  %v110 = vunpack.c.l.b16 %v58
  %v111 = vunpack.c.l.b16 %v59
  %v112 = vunpack.c.l.b16 %v60
  %v113 = vunpack.c.l.b16 %v61
  %v114 = vunpack.c.l.b16 %v62
  %v115 = vunpack.c.l.b16 %v63
  %v116 = vunpack.c.l.b16 %v64
  %v117 = vunpack.c.l.b16 %v65
  %v118 = vunpack.c.l.b16 %v66
  %v119 = vunpack.c.l.b16 %v67
  %v120 = vpack.c.b16 %v105, %v104
  %v121 = vpack.c.b16 %v107, %v106
  %v122 = vpack.c.b16 %v109, %v108
  %v123 = vpack.c.b16 %v111, %v110
  %v124 = vpack.c.b16 %v113, %v112
  %v125 = vpack.c.b16 %v115, %v114
  %v126 = vpack.c.b16 %v117, %v116
  %v127 = vpack.c.b16 %v119, %v118
  %v152 = vunpack.c.l.b16 %v72
  %v153 = vunpack.c.l.b16 %v73
  %v154 = vunpack.c.l.b16 %v74
  %v155 = vunpack.c.l.b16 %v75
  %v156 = vunpack.c.l.b16 %v76
  %v157 = vunpack.c.l.b16 %v77
  %v158 = vunpack.c.l.b16 %v78
  %v159 = vunpack.c.l.b16 %v79
  %v160 = vunpack.c.l.b16 %v80
  %v161 = vunpack.c.l.b16 %v81
  %v162 = vunpack.c.l.b16 %v82
  %v163 = vunpack.c.l.b16 %v83
  %v164 = vunpack.c.l.b16 %v84
  %v165 = vunpack.c.l.b16 %v85
  %v166 = vunpack.c.l.b16 %v86
  %v167 = vunpack.c.l.b16 %v87
  %v168 = vpack.c.b16 %v153, %v152
  %v169 = vpack.c.b16 %v155, %v154
  %v170 = vpack.c.b16 %v157, %v156
  %v171 = vpack.c.b16 %v159, %v158
  %v172 = vpack.c.b16 %v161, %v160
  %v173 = vpack.c.b16 %v163, %v162
  %v174 = vpack.c.b16 %v165, %v164
  %v175 = vpack.c.b16 %v167, %v166
  %184 = vmatprep.subr.bf16.mxu0 0
  %185 = vmatpush1.bf16.msra.mxu0 %v168
  %186 = vmatprep.subr.bf16.mxu0 0
  %187 = vmatpush1.bf16.msra.mxu0 %v169
  %188 = vmatprep.subr.bf16.mxu0 0
  %189 = vmatpush1.bf16.msra.mxu0 %v170
  %190 = vmatprep.subr.bf16.mxu0 0
  %191 = vmatpush1.bf16.msra.mxu0 %v171
  %192 = vmatprep.subr.bf16.mxu0 0
  %193 = vmatpush1.bf16.msra.mxu0 %v172
  %194 = vmatprep.subr.bf16.mxu0 0
  %195 = vmatpush1.bf16.msra.mxu0 %v173
  %196 = vmatprep.subr.bf16.mxu0 0
  %197 = vmatpush1.bf16.msra.mxu0 %v174
  %198 = vmatprep.subr.bf16.mxu0 0
  %199 = vmatpush1.bf16.msra.mxu0 %v175
  %200 = vmatprep.subr.bf16.mxu0 0
  %201 = vmatpush1.bf16.msra.mxu0 0
  %202 = vmatprep.subr.bf16.mxu0 0
  %203 = vmatpush1.bf16.msra.mxu0 0
  %204 = vmatprep.subr.bf16.mxu0 0
  %205 = vmatpush1.bf16.msra.mxu0 0
  %206 = vmatprep.subr.bf16.mxu0 0
  %207 = vmatpush1.bf16.msra.mxu0 0
  %208 = vmatprep.subr.bf16.mxu0 0
  %209 = vmatpush1.bf16.msra.mxu0 0
  %210 = vmatprep.subr.bf16.mxu0 0
  %211 = vmatpush1.bf16.msra.mxu0 0
  %212 = vmatprep.subr.bf16.mxu0 0
  %213 = vmatpush1.bf16.msra.mxu0 0
  %214 = vmatprep.subr.bf16.mxu0 0
  %215 = vmatpush1.bf16.msra.mxu0 0
  %216 = vmatprep.mubr.bf16.mxu0 0
  %217 = vmatmul.mubr.bf16.gmra.mrb[0].mxu0 %v120
  %v218 = vpop.f32.mrb[0].mxu0
  %v219 = vadd.f32 0.0, %v218
  %v220 = vpop.f32.mrb[0].mxu0
  %v221 = vpop.f32.mrb[0].mxu0
  %v222 = vadd.f32 0.0, %v221
  %v223 = vpop.f32.mrb[0].mxu0
  %224 = vmatprep.mubr.bf16.mxu0 0
  %225 = vmatmul.mubr.bf16.gmra.mrb[0].mxu0 %v121
  %v226 = vpop.f32.mrb[0].mxu0
  %v227 = vadd.f32 0.0, %v226
  %v228 = vpop.f32.mrb[0].mxu0
  %v229 = vpop.f32.mrb[0].mxu0
  %v230 = vadd.f32 0.0, %v229
  %v231 = vpop.f32.mrb[0].mxu0
  %232 = vmatprep.mubr.bf16.mxu0 0
  %233 = vmatmul.mubr.bf16.gmra.mrb[0].mxu0 %v122
  %v234 = vpop.f32.mrb[0].mxu0
  %v235 = vadd.f32 0.0, %v234
  %v236 = vpop.f32.mrb[0].mxu0
  %v237 = vpop.f32.mrb[0].mxu0
  %v238 = vadd.f32 0.0, %v237
  %v239 = vpop.f32.mrb[0].mxu0
  %240 = vmatprep.mubr.bf16.mxu0 0
  %241 = vmatmul.mubr.bf16.gmra.mrb[0].mxu0 %v123
  %v242 = vpop.f32.mrb[0].mxu0
  %v243 = vadd.f32 0.0, %v242
  %v244 = vpop.f32.mrb[0].mxu0
  %v245 = vpop.f32.mrb[0].mxu0
  %v246 = vadd.f32 0.0, %v245
  %v247 = vpop.f32.mrb[0].mxu0
  %248 = vmatprep.mubr.bf16.mxu0 0
  %249 = vmatmul.mubr.bf16.gmra.mrb[0].mxu0 %v124
  %v250 = vpop.f32.mrb[0].mxu0
  %v251 = vadd.f32 0.0, %v250
  %v252 = vpop.f32.mrb[0].mxu0
  %v253 = vpop.f32.mrb[0].mxu0
  %v254 = vadd.f32 0.0, %v253
  %v255 = vpop.f32.mrb[0].mxu0
  %256 = vmatprep.mubr.bf16.mxu0 0
  %257 = vmatmul.mubr.bf16.gmra.mrb[0].mxu0 %v125
  %v258 = vpop.f32.mrb[0].mxu0
  %v259 = vadd.f32 0.0, %v258
  %v260 = vpop.f32.mrb[0].mxu0
  %v261 = vpop.f32.mrb[0].mxu0
  %v262 = vadd.f32 0.0, %v261
  %v263 = vpop.f32.mrb[0].mxu0
  %264 = vmatprep.mubr.bf16.mxu0 0
  %265 = vmatmul.mubr.bf16.gmra.mrb[0].mxu0 %v126
  %v266 = vpop.f32.mrb[0].mxu0
  %v267 = vadd.f32 0.0, %v266
  %v268 = vpop.f32.mrb[0].mxu0
  %v269 = vpop.f32.mrb[0].mxu0
  %v270 = vadd.f32 0.0, %v269
  %v271 = vpop.f32.mrb[0].mxu0
  %272 = vmatprep.mubr.bf16.mxu0 0
  %273 = vmatmul.mubr.bf16.gmra.mrb[0].mxu0 %v127
  %v274 = vpop.f32.mrb[0].mxu0
  %v275 = vadd.f32 0.0, %v274
  %v276 = vpop.f32.mrb[0].mxu0
  %v277 = vpop.f32.mrb[0].mxu0
  %v278 = vadd.f32 0.0, %v277
  %v279 = vpop.f32.mrb[0].mxu0
  %280 = vdwg.mxu0
  %v281 = vadd.f32 %v36, %v219
  %v282 = vadd.f32 %v37, %v222
  %v283 = vadd.f32 %v38, %v227
  %v284 = vadd.f32 %v39, %v230
  %v285 = vadd.f32 %v40, %v235
  %v286 = vadd.f32 %v41, %v238
  %v287 = vadd.f32 %v42, %v243
  %v288 = vadd.f32 %v43, %v246
  %v289 = vadd.f32 %v44, %v251
  %v290 = vadd.f32 %v45, %v254
  %v291 = vadd.f32 %v46, %v259
  %v292 = vadd.f32 %v47, %v262
  %v293 = vadd.f32 %v48, %v267
  %v294 = vadd.f32 %v49, %v270
  %v295 = vadd.f32 %v50, %v275
  %v296 = vadd.f32 %v51, %v278
  %297 = vst [vmem:[#allocation2] sm:$0xff] %v281
  %298 = vst [vmem:[#allocation2 + $0x8] sm:$0xff] %v282
  %299 = vst [vmem:[#allocation2 + $0x10] sm:$0xff] %v283
  %300 = vst [vmem:[#allocation2 + $0x18] sm:$0xff] %v284
  %301 = vst [vmem:[#allocation2 + $0x20] sm:$0xff] %v285
  %302 = vst [vmem:[#allocation2 + $0x28] sm:$0xff] %v286
  %303 = vst [vmem:[#allocation2 + $0x30] sm:$0xff] %v287
  %304 = vst [vmem:[#allocation2 + $0x38] sm:$0xff] %v288
  %305 = vst [vmem:[#allocation2 + $0x40] sm:$0xff] %v289
  %306 = vst [vmem:[#allocation2 + $0x48] sm:$0xff] %v290
  %307 = vst [vmem:[#allocation2 + $0x50] sm:$0xff] %v291
  %308 = vst [vmem:[#allocation2 + $0x58] sm:$0xff] %v292
  %309 = vst [vmem:[#allocation2 + $0x60] sm:$0xff] %v293
  %310 = vst [vmem:[#allocation2 + $0x68] sm:$0xff] %v294
  %311 = vst [vmem:[#allocation2 + $0x70] sm:$0xff] %v295
  %312 = vst [vmem:[#allocation2 + $0x78] sm:$0xff] %v296
  // Predicated region
  $region18: #{net_forward.3} parent=0 // pred_check
    %p313 = pneg %p15
  $region19: #{net_forward.3} parent=0 // pred_check_branch
    %315 = sbr.rel (%p313) target = $region21
  $region20: #{net_forward.3} parent=0 // pred_region
    %v316 = vld [vmem:[#allocation2] sm:$0xff]
    %v317 = vld [vmem:[#allocation2 + $0x8] sm:$0xff]
    %v318 = vld [vmem:[#allocation2 + $0x10] sm:$0xff]
    %v319 = vld [vmem:[#allocation2 + $0x18] sm:$0xff]
    %v320 = vld [vmem:[#allocation2 + $0x20] sm:$0xff]
    %v321 = vld [vmem:[#allocation2 + $0x28] sm:$0xff]
    %v322 = vld [vmem:[#allocation2 + $0x30] sm:$0xff]
    %v323 = vld [vmem:[#allocation2 + $0x38] sm:$0xff]
    %v324 = vld [vmem:[#allocation2 + $0x40] sm:$0xff]
    %v325 = vld [vmem:[#allocation2 + $0x48] sm:$0xff]
    %v326 = vld [vmem:[#allocation2 + $0x50] sm:$0xff]
    %v327 = vld [vmem:[#allocation2 + $0x58] sm:$0xff]
    %v328 = vld [vmem:[#allocation2 + $0x60] sm:$0xff]
    %v329 = vld [vmem:[#allocation2 + $0x68] sm:$0xff]
    %v330 = vld [vmem:[#allocation2 + $0x70] sm:$0xff]
    %v331 = vld [vmem:[#allocation2 + $0x78] sm:$0xff]
    %v332 = vld [vmem:[%s2] sm:$0x1]
    %v334 = vlaneseq
    %v335 = vshrl.u32 %v334, 7
    %v336 = vsub.s32 0, %v335
    %v337 = vrot.slane %v332, %v336
    %v339 = vadd.f32 %v316, %v337
    %v340 = vadd.f32 %v317, %v337
    %v341 = vadd.f32 %v318, %v337
    %v342 = vadd.f32 %v319, %v337
    %v343 = vadd.f32 %v320, %v337
    %v344 = vadd.f32 %v321, %v337
    %v345 = vadd.f32 %v322, %v337
    %v346 = vadd.f32 %v323, %v337
    %v347 = vadd.f32 %v324, %v337
    %v348 = vadd.f32 %v325, %v337
    %v349 = vadd.f32 %v326, %v337
    %v350 = vadd.f32 %v327, %v337
    %v351 = vadd.f32 %v328, %v337
    %v352 = vadd.f32 %v329, %v337
    %v353 = vadd.f32 %v330, %v337
    %v354 = vadd.f32 %v331, %v337
    %v355 = vsub.f32 0.0, %v339
    %v356 = vsub.f32 0.0, %v340
    %v357 = vsub.f32 0.0, %v341
    %v358 = vsub.f32 0.0, %v342
    %v359 = vsub.f32 0.0, %v343
    %v360 = vsub.f32 0.0, %v344
    %v361 = vsub.f32 0.0, %v345
    %v362 = vsub.f32 0.0, %v346
    %v363 = vsub.f32 0.0, %v347
    %v364 = vsub.f32 0.0, %v348
    %v365 = vsub.f32 0.0, %v349
    %v366 = vsub.f32 0.0, %v350
    %v367 = vsub.f32 0.0, %v351
    %v368 = vsub.f32 0.0, %v352
    %v369 = vsub.f32 0.0, %v353
    %v370 = vsub.f32 0.0, %v354
    %v371 = vmul.f32 %v355, 1.442695
    %v372 = vpow.pop %v371
    %v373 = vmul.f32 %v356, 1.442695
    %v374 = vpow.pop %v373
    %v375 = vmul.f32 %v357, 1.442695
    %v376 = vpow.pop %v375
    %v377 = vmul.f32 %v358, 1.442695
    %v378 = vpow.pop %v377
    %v379 = vmul.f32 %v359, 1.442695
    %v380 = vpow.pop %v379
    %v381 = vmul.f32 %v360, 1.442695
    %v382 = vpow.pop %v381
    %v383 = vmul.f32 %v361, 1.442695
    %v384 = vpow.pop %v383
    %v385 = vmul.f32 %v362, 1.442695
    %v386 = vpow.pop %v385
    %v387 = vmul.f32 %v363, 1.442695
    %v388 = vpow.pop %v387
    %v389 = vmul.f32 %v364, 1.442695
    %v390 = vpow.pop %v389
    %v391 = vmul.f32 %v365, 1.442695
    %v392 = vpow.pop %v391
    %v393 = vmul.f32 %v366, 1.442695
    %v394 = vpow.pop %v393
    %v395 = vmul.f32 %v367, 1.442695
    %v396 = vpow.pop %v395
    %v397 = vmul.f32 %v368, 1.442695
    %v398 = vpow.pop %v397
    %v399 = vmul.f32 %v369, 1.442695
    %v400 = vpow.pop %v399
    %v401 = vmul.f32 %v370, 1.442695
    %v402 = vpow.pop %v401
    %v403 = vadd.f32 %v372, 1.0
    %v404 = vadd.f32 %v374, 1.0
    %v405 = vadd.f32 %v376, 1.0
    %v406 = vadd.f32 %v378, 1.0
    %v407 = vadd.f32 %v380, 1.0
    %v408 = vadd.f32 %v382, 1.0
    %v409 = vadd.f32 %v384, 1.0
    %v410 = vadd.f32 %v386, 1.0
    %v411 = vadd.f32 %v388, 1.0
    %v412 = vadd.f32 %v390, 1.0
    %v413 = vadd.f32 %v392, 1.0
    %v414 = vadd.f32 %v394, 1.0
    %v415 = vadd.f32 %v396, 1.0
    %v416 = vadd.f32 %v398, 1.0
    %v417 = vadd.f32 %v400, 1.0
    %v418 = vadd.f32 %v402, 1.0
    %v419 = vrcp.pop %v403
    %v420 = vrcp.pop %v404
    %v421 = vrcp.pop %v405
    %v422 = vrcp.pop %v406
    %v423 = vrcp.pop %v407
    %v424 = vrcp.pop %v408
    %v425 = vrcp.pop %v409
    %v426 = vrcp.pop %v410
    %v427 = vrcp.pop %v411
    %v428 = vrcp.pop %v412
    %v429 = vrcp.pop %v413
    %v430 = vrcp.pop %v414
    %v431 = vrcp.pop %v415
    %v432 = vrcp.pop %v416
    %v433 = vrcp.pop %v417
    %v434 = vrcp.pop %v418
    %v435 = vpack.c.bf16 %v420, %v419
    %v436 = vpack.c.bf16 %v422, %v421
    %v437 = vpack.c.bf16 %v424, %v423
    %v438 = vpack.c.bf16 %v426, %v425
    %v439 = vpack.c.bf16 %v428, %v427
    %v440 = vpack.c.bf16 %v430, %v429
    %v441 = vpack.c.bf16 %v432, %v431
    %v442 = vpack.c.bf16 %v434, %v433
    %v451 = vunpack.c.l.b16 %v435
    %v452 = vunpack.c.h.b16 %v435
    %v453 = vunpack.c.l.b16 %v436
    %v454 = vunpack.c.h.b16 %v436
    %v455 = vunpack.c.l.b16 %v437
    %v456 = vunpack.c.h.b16 %v437
    %v457 = vunpack.c.l.b16 %v438
    %v458 = vunpack.c.h.b16 %v438
    %v459 = vunpack.c.l.b16 %v439
    %v460 = vunpack.c.h.b16 %v439
    %v461 = vunpack.c.l.b16 %v440
    %v462 = vunpack.c.h.b16 %v440
    %v463 = vunpack.c.l.b16 %v441
    %v464 = vunpack.c.h.b16 %v441
    %v465 = vunpack.c.l.b16 %v442
    %v466 = vunpack.c.h.b16 %v442
    %v467 = vpack.c.b16 %v451, %v451
    %v468 = vpack.c.b16 %v452, %v452
    %v469 = vpack.c.b16 %v453, %v453
    %v470 = vpack.c.b16 %v454, %v454
    %v471 = vpack.c.b16 %v455, %v455
    %v472 = vpack.c.b16 %v456, %v456
    %v473 = vpack.c.b16 %v457, %v457
    %v474 = vpack.c.b16 %v458, %v458
    %v475 = vpack.c.b16 %v459, %v459
    %v476 = vpack.c.b16 %v460, %v460
    %v477 = vpack.c.b16 %v461, %v461
    %v478 = vpack.c.b16 %v462, %v462
    %v479 = vpack.c.b16 %v463, %v463
    %v480 = vpack.c.b16 %v464, %v464
    %v481 = vpack.c.b16 %v465, %v465
    %v482 = vpack.c.b16 %v466, %v466
    %499 = vst [vmem:[%s3] sm:$0xf] %v467
    %500 = vst [vmem:[%s3 + $0x4] sm:$0xf] %v468
    %501 = vst [vmem:[%s3 + $0x8] sm:$0xf] %v469
    %502 = vst [vmem:[%s3 + $0xc] sm:$0xf] %v470
    %503 = vst [vmem:[%s3 + $0x10] sm:$0xf] %v471
    %504 = vst [vmem:[%s3 + $0x14] sm:$0xf] %v472
    %505 = vst [vmem:[%s3 + $0x18] sm:$0xf] %v473
    %506 = vst [vmem:[%s3 + $0x1c] sm:$0xf] %v474
    %507 = vst [vmem:[%s3 + $0x20] sm:$0xf] %v475
    %508 = vst [vmem:[%s3 + $0x24] sm:$0xf] %v476
    %509 = vst [vmem:[%s3 + $0x28] sm:$0xf] %v477
    %510 = vst [vmem:[%s3 + $0x2c] sm:$0xf] %v478
    %511 = vst [vmem:[%s3 + $0x30] sm:$0xf] %v479
    %512 = vst [vmem:[%s3 + $0x34] sm:$0xf] %v480
    %513 = vst [vmem:[%s3 + $0x38] sm:$0xf] %v481
    %514 = vst [vmem:[%s3 + $0x3c] sm:$0xf] %v482
  $region21: #{net_forward.3} parent=0 // pred_fallthru
    _
  // Predicated region
  $region22: #{net_forward.3} parent=0 // pred_check
    _
  $region23: #{net_forward.3} parent=0 // pred_check_branch
    %516 = sbr.rel (0) target = $region25
  $region24: #{net_forward.3} parent=0 // pred_region
    _
  $region25: #{net_forward.3} parent=0 // pred_fallthru
    _
  // Predicated region
  $region26: #{net_forward.3} parent=0 // pred_check
    _
  $region27: #{net_forward.3} parent=0 // pred_check_branch
    %518 = sbr.rel (0) target = $region29
  $region28: #{net_forward.3} parent=0 // pred_region
    _
  $region29: #{net_forward.3} parent=0 // pred_fallthru
    _

</llo_original>
